<compile_context>
chip_gen: v5e
topology: v5e:2x2
jax: 0.10.0
libtpu: 0.0.40
codegen_flags: <defaults>
</compile_context>

<pallas_src>
import functools

import jax
import jax.numpy as jnp
from jax.experimental import pallas as pl
from jax.experimental.pallas import tpu as pltpu


def _elu(v):
    # ELU via exp(min(v,0)) - 1 (abs err ~1e-7 in f32 near 0); clamp keeps the unselected
    # branch finite and avoids relying on a lax.expm1 lowering in Mosaic.
    return jnp.where(v > 0.0, v, jnp.exp(jnp.minimum(v, 0.0)) - 1.0)


# ---------------------------------------------------------------------------
# Fused kernel: full TransLayer forward for Bb batch elements per grid step.
# ---------------------------------------------------------------------------
def _trans_layer_kernel(x_ref, adj_ref, w_all_ref, a_blk_ref, w_out_ref, a_out_t_ref,
                        p_row_ref, y_ref, p_vmem,
                        *, alpha, nheads, nhid, mxu_dtype):
    HF = nheads * nhid
    neg_inf = jnp.float32(-9e15)

    def cast(v):  # MXU-operand cast only; elementwise math stays f32
        return v if v.dtype == mxu_dtype else v.astype(mxu_dtype)

    def masked_softmax(logits, mask):
        e = jnp.where(logits > 0.0, logits, alpha * logits)          # LeakyReLU(alpha)
        masked = jnp.where(mask, e, neg_inf)
        m = jnp.max(masked, axis=-1, keepdims=True)
        pexp = jnp.exp(masked - m)
        denom = jnp.sum(pexp, axis=-1, keepdims=True)
        # attention dropout is identity in eval mode
        return pexp * pl.reciprocal(denom, approx=True)              # EUP slot

    # ---- multi-head GAT layer: one projection matmul for the whole batch block ----
    bb, n, fin = x_ref.shape
    x2d = cast(x_ref[...].reshape(bb * n, fin))
    wh_all = jnp.dot(x2d, w_all_ref[...],
                     preferred_element_type=jnp.float32).reshape(bb, n, HF)   # f32
    wh_all_mx = cast(wh_all)

    for b in range(bb):                                              # static unroll (Bb small)
        adj_mask = adj_ref[b].astype(jnp.int32) > 0                  # (N, N) from int8
        wh_mx = wh_all_mx[b]                                         # (N, HF)
        # Attention logits for every head at once: (N, 2H) = (N, HF) @ blockdiag(a).
        logits = jnp.dot(wh_mx, a_blk_ref[...], preferred_element_type=jnp.float32)

        for h in range(nheads):                                      # static unroll (H small)
            lo = h * nhid
            e2_row = logits[:, nheads + h:nheads + h + 1].T          # tiny (1, N) transpose
            attn = masked_softmax(logits[:, h:h + 1] + e2_row, adj_mask)       # (N, N)
            hh = jnp.dot(cast(attn), wh_mx[:, lo:lo + nhid],
                         preferred_element_type=jnp.float32)         # (N, nhid)
            p_vmem[:, lo:lo + nhid] = _elu(hh)                       # concat=True -> per-head ELU

        p = p_vmem[...]                                              # (N, HF) f32, stays in VMEM
        p_row_ref[b] = p[0:1, :]                                     # only row 0 goes to HBM

        # ---- output GAT head (concat=False) + outer F.elu: only query row 0 is consumed ----
        wh2 = jnp.dot(cast(p), w_out_ref[...], preferred_element_type=jnp.float32)   # (N, nclass)
        wh2_mx = cast(wh2)
        e_out = jnp.dot(wh2_mx, a_out_t_ref[...], preferred_element_type=jnp.float32)  # (N, 2)
        e_row0 = e_out[0:1, 0:1] + e_out[:, 1:2].T                   # (1, N)
        attn0 = masked_softmax(e_row0, adj_mask[0:1, :])             # (1, N)
        y0 = jnp.dot(cast(attn0), wh2_mx, preferred_element_type=jnp.float32)  # (1, nclass)
        y_ref[b] = _elu(y0)


def _largest_divisor_leq(n, cap):
    for d in range(min(n, cap), 0, -1):
        if n % d == 0:
            return d
    return 1


def trans_layer_pallas(x, adj_i8, w_all, a_blk, w_out, a_out_t, *, alpha, nheads, nhid,
                       mxu_dtype=jnp.bfloat16, max_batch_block=8):
    """Fused TransLayer forward. Returns (p_row0, y_row0) of shapes (B, H*nhid), (B, nclass)."""
    B, N, Fin = x.shape
    HF = nheads * nhid
    nclass = w_out.shape[1]
    Bb = _largest_divisor_leq(B, max_batch_block)

    # MXU operands in mxu_dtype (halves weight DMA too); accumulation stays f32 in-kernel.
    w_all = w_all.astype(mxu_dtype)
    a_blk = a_blk.astype(mxu_dtype)
    w_out = w_out.astype(mxu_dtype)
    a_out_t = a_out_t.astype(mxu_dtype)

    kern = functools.partial(_trans_layer_kernel, alpha=alpha, nheads=nheads,
                             nhid=nhid, mxu_dtype=mxu_dtype)

    # VMEM footprint estimate (double-buffered ins/outs + weights + scratch + live temps).
    wbytes = jnp.dtype(mxu_dtype).itemsize
    est = (2 * Bb * N * Fin * 4                                   # x
           + 2 * Bb * N * N * 1                                   # adj (int8)
           + 2 * (Fin * HF + HF * 2 * nheads + HF * nclass + nclass * 2) * wbytes
           + 2 * Bb * (HF + nclass) * 4                           # outputs
           + N * HF * 4                                           # p scratch
           + Bb * N * HF * (4 + wbytes)                           # wh_all f32 + cast
           + 6 * N * N * 4)                                       # per-head attn temps
    vmem_limit = int(min(100 * 2**20, max(32 * 2**20, 4 * est)))

    p_row, y_row = pl.pallas_call(
        kern,
        out_shape=(jax.ShapeDtypeStruct((B, 1, HF), jnp.float32),
                   jax.ShapeDtypeStruct((B, 1, nclass), jnp.float32)),
        grid_spec=pltpu.PrefetchScalarGridSpec(
            num_scalar_prefetch=0,
            grid=(B // Bb,),
            in_specs=[
                pl.BlockSpec((Bb, N, Fin), lambda b: (b, 0, 0)),      # x
                pl.BlockSpec((Bb, N, N), lambda b: (b, 0, 0)),        # adj mask (int8)
                pl.BlockSpec((Fin, HF), lambda b: (0, 0)),            # W heads (stacked)
                pl.BlockSpec((HF, 2 * nheads), lambda b: (0, 0)),     # blockdiag(a1 | a2)
                pl.BlockSpec((HF, nclass), lambda b: (0, 0)),         # W out
                pl.BlockSpec((nclass, 2), lambda b: (0, 0)),          # a_out^T
            ],
            out_specs=[
                pl.BlockSpec((Bb, 1, HF), lambda b: (b, 0, 0)),       # p[:, 0, :]
                pl.BlockSpec((Bb, 1, nclass), lambda b: (b, 0, 0)),   # elu(out_att(p))[:, 0, :]
            ],
            scratch_shapes=[pltpu.VMEM((N, HF), jnp.float32)],        # resident p
        ),
        compiler_params=pltpu.CompilerParams(
            dimension_semantics=("parallel",),
            vmem_limit_bytes=vmem_limit),
    )(x, adj_i8, w_all, a_blk, w_out, a_out_t)
    return p_row[:, 0, :], y_row[:, 0, :]


# ---------------------------------------------------------------------------
# Parameter init (xavier_uniform with gain=1.414) and forward wrapper.
# ---------------------------------------------------------------------------
def _xavier_uniform(key, shape, gain=1.414):
    fan_in, fan_out = shape[-2], shape[-1]
    limit = gain * (6.0 / (fan_in + fan_out)) ** 0.5
    return jax.random.uniform(key, shape, jnp.float32, -limit, limit)


def init_trans_layer(key, nfeat, nhid, nclass, nheads):
    keys = jax.random.split(key, 2 * nheads + 2)
    w_heads = [_xavier_uniform(keys[i], (nfeat, nhid)) for i in range(nheads)]
    a_heads = [_xavier_uniform(keys[nheads + i], (2 * nhid, 1)) for i in range(nheads)]
    w_out = _xavier_uniform(keys[-2], (nhid * nheads, nclass))
    a_out = _xavier_uniform(keys[-1], (2 * nclass, 1))
    HF = nhid * nheads
    # Block-diagonal stacking of the per-head attention vectors so a single (N,HF)@(HF,2H)
    # matmul yields e1/e2 for every head at once:
    #   a_blk[h*nhid:(h+1)*nhid, h]          = a_h[:nhid]
    #   a_blk[h*nhid:(h+1)*nhid, nheads + h] = a_h[nhid:]
    a_blk = jnp.zeros((HF, 2 * nheads), jnp.float32)
    for h in range(nheads):
        a_blk = a_blk.at[h * nhid:(h + 1) * nhid, h].set(a_heads[h][:nhid, 0])
        a_blk = a_blk.at[h * nhid:(h + 1) * nhid, nheads + h].set(a_heads[h][nhid:, 0])
    a_out_rows = jnp.stack([a_out[:nclass, 0], a_out[nclass:, 0]])      # (2, nclass)
    return dict(
        w_all=jnp.concatenate(w_heads, axis=1),                     # (Fin, H*nhid)
        a1=jnp.stack([a[:nhid, 0] for a in a_heads]),               # (H, nhid)   (reference)
        a2=jnp.stack([a[nhid:, 0] for a in a_heads]),               # (H, nhid)   (reference)
        a_blk=a_blk,                                                # (H*nhid, 2H) (kernel)
        w_out=w_out,                                                # (H*nhid, nclass)
        a_out=a_out_rows,                                           # (2, nclass) (reference)
        a_out_t=a_out_rows.T,                                       # (nclass, 2) (kernel)
    )


def trans_layer_forward(params, x, adj, *, alpha=0.2, mxu_dtype=jnp.bfloat16):
    """Matches TransLayer.forward (eval mode, rate=False). Returns (x_cls, p_cls)."""
    # F.dropout(x/p, ...) -> identity in eval mode.
    H, nhid = params["a1"].shape
    adj_i8 = (adj > 0).astype(jnp.int8)   # kernel only needs the mask; 4x less DMA than f32
    p_cls, y_cls = trans_layer_pallas(
        x, adj_i8, params["w_all"], params["a_blk"], params["w_out"], params["a_out_t"],
        alpha=alpha, nheads=H, nhid=nhid, mxu_dtype=mxu_dtype)
    # x[:, 0, :].squeeze() / p[:, 0, :].squeeze(); squeeze is a no-op for B > 1.
    # TODO(synk): rate=True branch (extra Linear on [x, rate]) not exercised (rate=False).
    return y_cls, p_cls


# ---------------------------------------------------------------------------
# Pure-JAX references for the correctness check. `mxu_dtype=None` is the exact f32
# module semantics; `mxu_dtype=jnp.bfloat16` mirrors the kernel's MXU-operand rounding.
# ---------------------------------------------------------------------------
def _gat_ref(x, adj, w, a, alpha, concat, cast):
    wh = jnp.einsum("bnf,fo->bno", cast(x), cast(w), preferred_element_type=jnp.float32)
    whc = cast(wh)
    fout = w.shape[1]
    e1 = jnp.einsum("bno,ok->bnk", whc, cast(a[:fout, :]), preferred_element_type=jnp.float32)
    e2 = jnp.einsum("bno,ok->bnk", whc, cast(a[fout:, :]), preferred_element_type=jnp.float32)
    e = e1 + jnp.swapaxes(e2, -1, -2)
    e = jnp.where(e > 0, e, alpha * e)
    masked = jnp.where(adj > 0, e, -9e15)
    attn = jax.nn.softmax(masked, axis=-1)
    h = jnp.einsum("bnm,bmo->bno", cast(attn), whc, preferred_element_type=jnp.float32)
    return jax.nn.elu(h) if concat else h


def _forward_ref(params, x, adj, alpha, mxu_dtype=None):
    cast = (lambda t: t.astype(mxu_dtype)) if mxu_dtype is not None else (lambda t: t)
    H, nhid = params["a1"].shape
    heads = []
    for h in range(H):
        w = params["w_all"][:, h * nhid:(h + 1) * nhid]
        a = jnp.concatenate([params["a1"][h], params["a2"][h]])[:, None]
        heads.append(_gat_ref(x, adj, w, a, alpha, True, cast))
    p = jnp.concatenate(heads, axis=2)
    a_out = jnp.concatenate([params["a_out"][0], params["a_out"][1]])[:, None]
    y = jax.nn.elu(_gat_ref(p, adj, params["w_out"], a_out, alpha, False, cast))
    return y[:, 0, :], p[:, 0, :]


if __name__ == "__main__":
    B, N = 2, 8
    nfeat, nhid, nclass, nheads = 16, 8, 4, 2
    alpha = 0.2

    key = jax.random.PRNGKey(0)
    k_x, k_adj, k_p = jax.random.split(key, 3)
    x = jax.random.normal(k_x, (B, N, nfeat), jnp.float32)
    adj = (jax.random.uniform(k_adj, (B, N, N)) > 0.5).astype(jnp.float32)
    adj = jnp.minimum(adj + jnp.eye(N, dtype=jnp.float32)[None], 1.0)  # self loops

    params = init_trans_layer(k_p, nfeat, nhid, nclass, nheads)

    x_out, p_out = trans_layer_forward(params, x, adj, alpha=alpha)
    jax.block_until_ready((x_out, p_out))
    assert x_out.shape == (B, nclass) and p_out.shape == (B, nhid * nheads)

    # Tight check vs. a reference that mirrors the kernel's bf16 MXU-operand rounding; the
    # remaining deltas are the approx-reciprocal softmax normalization and summation order.
    x_ref_bf, p_ref_bf = _forward_ref(params, x, adj, alpha, mxu_dtype=jnp.bfloat16)
    assert jnp.allclose(x_out, x_ref_bf, atol=2e-2, rtol=2e-2)
    assert jnp.allclose(p_out, p_ref_bf, atol=2e-2, rtol=2e-2)

    # Sanity check vs. the exact f32 module semantics (budget = bf16 MXU operand rounding).
    x_ref, p_ref = _forward_ref(params, x, adj, alpha)
    assert jnp.allclose(x_out, x_ref, atol=1e-1, rtol=1e-1)
    assert jnp.allclose(p_out, p_ref, atol=1e-1, rtol=1e-1)

    print("KERNEL_OK")
</pallas_src>

<mosaic_0001>
module attributes {stable_mosaic.version = 11 : i64} {
  func.func @_trans_layer_kernel(%arg0: i32, %arg1: memref<2x8x16xf32, #tpu.memory_space<vmem>>, %arg2: memref<2x8x8xi8, #tpu.memory_space<vmem>>, %arg3: memref<16x16xbf16, #tpu.memory_space<vmem>>, %arg4: memref<16x4xbf16, #tpu.memory_space<vmem>>, %arg5: memref<16x4xbf16, #tpu.memory_space<vmem>>, %arg6: memref<4x2xbf16, #tpu.memory_space<vmem>>, %arg7: memref<2x1x16xf32, #tpu.memory_space<vmem>>, %arg8: memref<2x1x4xf32, #tpu.memory_space<vmem>>, %arg9: memref<8x16xf32, #tpu.memory_space<vmem>>) attributes {dimension_semantics = [#tpu.dimension_semantics<parallel>], iteration_bounds = array<i64: 1>, scalar_prefetch = 0 : i64, scratch_operands = 1 : i64, tpu.core_type = #tpu.core_type<tc>, window_params = [{transform_indices = @transform_0, window_bounds = array<i64: 2, 8, 16>}, {transform_indices = @transform_1, window_bounds = array<i64: 2, 8, 8>}, {pipeline_mode = #tpu.pipeline_mode<synchronous>, transform_indices = @transform_2, window_bounds = array<i64: 16, 16>}, {pipeline_mode = #tpu.pipeline_mode<synchronous>, transform_indices = @transform_3, window_bounds = array<i64: 16, 4>}, {pipeline_mode = #tpu.pipeline_mode<synchronous>, transform_indices = @transform_4, window_bounds = array<i64: 16, 4>}, {pipeline_mode = #tpu.pipeline_mode<synchronous>, transform_indices = @transform_5, window_bounds = array<i64: 4, 2>}, {transform_indices = @transform_6, window_bounds = array<i64: 2, 1, 16>}, {transform_indices = @transform_7, window_bounds = array<i64: 2, 1, 4>}]} {
    %c0 = arith.constant 0 : index
    %c0_0 = arith.constant 0 : index
    %c0_1 = arith.constant 0 : index
    %0 = vector.load %arg1[%c0, %c0_0, %c0_1] : memref<2x8x16xf32, #tpu.memory_space<vmem>>, vector<2x8x16xf32>
    %1 = vector.shape_cast %0 : vector<2x8x16xf32> to vector<16x16xf32>
    %2 = arith.truncf %1 : vector<16x16xf32> to vector<16x16xbf16>
    %c0_2 = arith.constant 0 : index
    %c0_3 = arith.constant 0 : index
    %3 = vector.load %arg3[%c0_2, %c0_3] : memref<16x16xbf16, #tpu.memory_space<vmem>>, vector<16x16xbf16>
    %cst = arith.constant dense<0.000000e+00> : vector<16x16xf32>
    %4 = tpu.matmul %2, %3, %cst {dimension_numbers = #tpu.dot_dimension_numbers<[1], [0], [0], [1], [0, 0, 1, 1], [], []>} : vector<16x16xbf16>, vector<16x16xbf16>, vector<16x16xf32> -> vector<16x16xf32>
    %5 = vector.shape_cast %4 : vector<16x16xf32> to vector<2x8x16xf32>
    %6 = arith.truncf %5 : vector<2x8x16xf32> to vector<2x8x16xbf16>
    %c0_4 = arith.constant 0 : index
    %c0_5 = arith.constant 0 : index
    %c0_6 = arith.constant 0 : index
    %7 = vector.load %arg2[%c0_4, %c0_5, %c0_6] : memref<2x8x8xi8, #tpu.memory_space<vmem>>, vector<1x8x8xi8>
    %8 = vector.shape_cast %7 : vector<1x8x8xi8> to vector<8x8xi8>
    %9 = arith.extsi %8 : vector<8x8xi8> to vector<8x8xi32>
    %c0_i32 = arith.constant 0 : i32
    %10 = vector.broadcast %c0_i32 : i32 to vector<8x8xi32>
    %11 = arith.cmpi sgt, %9, %10 : vector<8x8xi32>
    %12 = vector.extract_strided_slice %6 {offsets = [0, 0, 0], sizes = [1, 8, 16], strides = [1, 1, 1]} : vector<2x8x16xbf16> to vector<1x8x16xbf16>
    %13 = vector.shape_cast %12 : vector<1x8x16xbf16> to vector<8x16xbf16>
    %c0_7 = arith.constant 0 : index
    %c0_8 = arith.constant 0 : index
    %14 = vector.load %arg4[%c0_7, %c0_8] : memref<16x4xbf16, #tpu.memory_space<vmem>>, vector<16x4xbf16>
    %cst_9 = arith.constant dense<0.000000e+00> : vector<8x4xf32>
    %15 = tpu.matmul %13, %14, %cst_9 {dimension_numbers = #tpu.dot_dimension_numbers<[1], [0], [0], [1], [0, 0, 1, 1], [], []>} : vector<8x16xbf16>, vector<16x4xbf16>, vector<8x4xf32> -> vector<8x4xf32>
    %16 = vector.extract_strided_slice %15 {offsets = [0, 2], sizes = [8, 1], strides = [1, 1]} : vector<8x4xf32> to vector<8x1xf32>
    %17 = tpu.transpose %16, [1, 0] : vector<8x1xf32> -> vector<1x8xf32>
    %18 = vector.extract_strided_slice %15 {offsets = [0, 0], sizes = [8, 1], strides = [1, 1]} : vector<8x4xf32> to vector<8x1xf32>
    %19 = vector.broadcast %18 : vector<8x1xf32> to vector<8x8xf32>
    %20 = vector.broadcast %17 : vector<1x8xf32> to vector<8x8xf32>
    %21 = arith.addf %19, %20 : vector<8x8xf32>
    %cst_10 = arith.constant 0.000000e+00 : f32
    %22 = vector.broadcast %cst_10 : f32 to vector<8x8xf32>
    %23 = arith.cmpf ogt, %21, %22 : vector<8x8xf32>
    %cst_11 = arith.constant 2.000000e-01 : f32
    %24 = vector.broadcast %cst_11 : f32 to vector<8x8xf32>
    %25 = arith.mulf %24, %21 : vector<8x8xf32>
    %26 = arith.select %23, %21, %25 : vector<8x8xi1>, vector<8x8xf32>
    %cst_12 = arith.constant -9.000000e+15 : f32
    %27 = vector.broadcast %cst_12 : f32 to vector<8x8xf32>
    %28 = arith.select %11, %26, %27 : vector<8x8xi1>, vector<8x8xf32>
    %cst_13 = arith.constant dense<0xFF800000> : vector<8xf32>
    %29 = vector.multi_reduction <maximumf>, %28, %cst_13 [1] : vector<8x8xf32> to vector<8xf32>
    %30 = vector.shape_cast %29 : vector<8xf32> to vector<8x1xf32>
    %31 = vector.broadcast %30 : vector<8x1xf32> to vector<8x8xf32>
    %32 = arith.subf %28, %31 : vector<8x8xf32>
    %33 = math.exp %32 : vector<8x8xf32>
    %cst_14 = arith.constant dense<0.000000e+00> : vector<8xf32>
    %34 = vector.multi_reduction <add>, %33, %cst_14 [1] : vector<8x8xf32> to vector<8xf32>
    %35 = vector.shape_cast %34 : vector<8xf32> to vector<8x1xf32>
    %36 = tpu.reciprocal %35 {approx = true} : vector<8x1xf32> -> vector<8x1xf32>
    %37 = vector.broadcast %36 : vector<8x1xf32> to vector<8x8xf32>
    %38 = arith.mulf %33, %37 : vector<8x8xf32>
    %39 = arith.truncf %38 : vector<8x8xf32> to vector<8x8xbf16>
    %40 = vector.extract_strided_slice %13 {offsets = [0, 0], sizes = [8, 8], strides = [1, 1]} : vector<8x16xbf16> to vector<8x8xbf16>
    %cst_15 = arith.constant dense<0.000000e+00> : vector<8x8xf32>
    %41 = tpu.matmul %39, %40, %cst_15 {dimension_numbers = #tpu.dot_dimension_numbers<[1], [0], [0], [1], [0, 0, 1, 1], [], []>} : vector<8x8xbf16>, vector<8x8xbf16>, vector<8x8xf32> -> vector<8x8xf32>
    %cst_16 = arith.constant 0.000000e+00 : f32
    %42 = vector.broadcast %cst_16 : f32 to vector<8x8xf32>
    %43 = arith.cmpf ogt, %41, %42 : vector<8x8xf32>
    %cst_17 = arith.constant 0.000000e+00 : f32
    %44 = vector.broadcast %cst_17 : f32 to vector<8x8xf32>
    %45 = arith.minimumf %41, %44 : vector<8x8xf32>
    %46 = math.exp %45 : vector<8x8xf32>
    %cst_18 = arith.constant 1.000000e+00 : f32
    %47 = vector.broadcast %cst_18 : f32 to vector<8x8xf32>
    %48 = arith.subf %46, %47 : vector<8x8xf32>
    %49 = arith.select %43, %41, %48 : vector<8x8xi1>, vector<8x8xf32>
    %c0_19 = arith.constant 0 : index
    %c0_20 = arith.constant 0 : index
    %50 = vector.load %arg9[%c0_19, %c0_20] : memref<8x16xf32, #tpu.memory_space<vmem>>, vector<8x8xf32>
    tpu.vector_store %arg9[%c0_19, %c0_20], %49 {strides = array<i32>} : memref<8x16xf32, #tpu.memory_space<vmem>>, vector<8x8xf32>,
    %51 = vector.extract_strided_slice %15 {offsets = [0, 3], sizes = [8, 1], strides = [1, 1]} : vector<8x4xf32> to vector<8x1xf32>
    %52 = tpu.transpose %51, [1, 0] : vector<8x1xf32> -> vector<1x8xf32>
    %53 = vector.extract_strided_slice %15 {offsets = [0, 1], sizes = [8, 1], strides = [1, 1]} : vector<8x4xf32> to vector<8x1xf32>
    %54 = vector.broadcast %53 : vector<8x1xf32> to vector<8x8xf32>
    %55 = vector.broadcast %52 : vector<1x8xf32> to vector<8x8xf32>
    %56 = arith.addf %54, %55 : vector<8x8xf32>
    %cst_21 = arith.constant 0.000000e+00 : f32
    %57 = vector.broadcast %cst_21 : f32 to vector<8x8xf32>
    %58 = arith.cmpf ogt, %56, %57 : vector<8x8xf32>
    %cst_22 = arith.constant 2.000000e-01 : f32
    %59 = vector.broadcast %cst_22 : f32 to vector<8x8xf32>
    %60 = arith.mulf %59, %56 : vector<8x8xf32>
    %61 = arith.select %58, %56, %60 : vector<8x8xi1>, vector<8x8xf32>
    %cst_23 = arith.constant -9.000000e+15 : f32
    %62 = vector.broadcast %cst_23 : f32 to vector<8x8xf32>
    %63 = arith.select %11, %61, %62 : vector<8x8xi1>, vector<8x8xf32>
    %cst_24 = arith.constant dense<0xFF800000> : vector<8xf32>
    %64 = vector.multi_reduction <maximumf>, %63, %cst_24 [1] : vector<8x8xf32> to vector<8xf32>
    %65 = vector.shape_cast %64 : vector<8xf32> to vector<8x1xf32>
    %66 = vector.broadcast %65 : vector<8x1xf32> to vector<8x8xf32>
    %67 = arith.subf %63, %66 : vector<8x8xf32>
    %68 = math.exp %67 : vector<8x8xf32>
    %cst_25 = arith.constant dense<0.000000e+00> : vector<8xf32>
    %69 = vector.multi_reduction <add>, %68, %cst_25 [1] : vector<8x8xf32> to vector<8xf32>
    %70 = vector.shape_cast %69 : vector<8xf32> to vector<8x1xf32>
    %71 = tpu.reciprocal %70 {approx = true} : vector<8x1xf32> -> vector<8x1xf32>
    %72 = vector.broadcast %71 : vector<8x1xf32> to vector<8x8xf32>
    %73 = arith.mulf %68, %72 : vector<8x8xf32>
    %74 = arith.truncf %73 : vector<8x8xf32> to vector<8x8xbf16>
    %75 = vector.extract_strided_slice %13 {offsets = [0, 8], sizes = [8, 8], strides = [1, 1]} : vector<8x16xbf16> to vector<8x8xbf16>
    %cst_26 = arith.constant dense<0.000000e+00> : vector<8x8xf32>
    %76 = tpu.matmul %74, %75, %cst_26 {dimension_numbers = #tpu.dot_dimension_numbers<[1], [0], [0], [1], [0, 0, 1, 1], [], []>} : vector<8x8xbf16>, vector<8x8xbf16>, vector<8x8xf32> -> vector<8x8xf32>
    %cst_27 = arith.constant 0.000000e+00 : f32
    %77 = vector.broadcast %cst_27 : f32 to vector<8x8xf32>
    %78 = arith.cmpf ogt, %76, %77 : vector<8x8xf32>
    %cst_28 = arith.constant 0.000000e+00 : f32
    %79 = vector.broadcast %cst_28 : f32 to vector<8x8xf32>
    %80 = arith.minimumf %76, %79 : vector<8x8xf32>
    %81 = math.exp %80 : vector<8x8xf32>
    %cst_29 = arith.constant 1.000000e+00 : f32
    %82 = vector.broadcast %cst_29 : f32 to vector<8x8xf32>
    %83 = arith.subf %81, %82 : vector<8x8xf32>
    %84 = arith.select %78, %76, %83 : vector<8x8xi1>, vector<8x8xf32>
    %c0_30 = arith.constant 0 : index
    %c8 = arith.constant 8 : index
    %85 = vector.load %arg9[%c0_30, %c8] : memref<8x16xf32, #tpu.memory_space<vmem>>, vector<8x8xf32>
    tpu.vector_store %arg9[%c0_30, %c8], %84 {strides = array<i32>} : memref<8x16xf32, #tpu.memory_space<vmem>>, vector<8x8xf32>,
    %c0_31 = arith.constant 0 : index
    %c0_32 = arith.constant 0 : index
    %86 = vector.load %arg9[%c0_31, %c0_32] : memref<8x16xf32, #tpu.memory_space<vmem>>, vector<8x16xf32>
    %87 = vector.extract_strided_slice %86 {offsets = [0, 0], sizes = [1, 16], strides = [1, 1]} : vector<8x16xf32> to vector<1x16xf32>
    %c0_33 = arith.constant 0 : index
    %c0_34 = arith.constant 0 : index
    %c0_35 = arith.constant 0 : index
    %88 = vector.load %arg7[%c0_33, %c0_34, %c0_35] : memref<2x1x16xf32, #tpu.memory_space<vmem>>, vector<1x1x16xf32>
    %89 = vector.shape_cast %88 : vector<1x1x16xf32> to vector<1x16xf32>
    %90 = vector.shape_cast %87 : vector<1x16xf32> to vector<1x1x16xf32>
    tpu.vector_store %arg7[%c0_33, %c0_34, %c0_35], %90 {strides = array<i32>} : memref<2x1x16xf32, #tpu.memory_space<vmem>>, vector<1x1x16xf32>,
    %91 = arith.truncf %86 : vector<8x16xf32> to vector<8x16xbf16>
    %c0_36 = arith.constant 0 : index
    %c0_37 = arith.constant 0 : index
    %92 = vector.load %arg5[%c0_36, %c0_37] : memref<16x4xbf16, #tpu.memory_space<vmem>>, vector<16x4xbf16>
    %cst_38 = arith.constant dense<0.000000e+00> : vector<8x4xf32>
    %93 = tpu.matmul %91, %92, %cst_38 {dimension_numbers = #tpu.dot_dimension_numbers<[1], [0], [0], [1], [0, 0, 1, 1], [], []>} : vector<8x16xbf16>, vector<16x4xbf16>, vector<8x4xf32> -> vector<8x4xf32>
    %94 = arith.truncf %93 : vector<8x4xf32> to vector<8x4xbf16>
    %c0_39 = arith.constant 0 : index
    %c0_40 = arith.constant 0 : index
    %95 = vector.load %arg6[%c0_39, %c0_40] : memref<4x2xbf16, #tpu.memory_space<vmem>>, vector<4x2xbf16>
    %cst_41 = arith.constant dense<0.000000e+00> : vector<8x2xf32>
    %96 = tpu.matmul %94, %95, %cst_41 {dimension_numbers = #tpu.dot_dimension_numbers<[1], [0], [0], [1], [0, 0, 1, 1], [], []>} : vector<8x4xbf16>, vector<4x2xbf16>, vector<8x2xf32> -> vector<8x2xf32>
    %97 = vector.extract_strided_slice %96 {offsets = [0, 0], sizes = [1, 1], strides = [1, 1]} : vector<8x2xf32> to vector<1x1xf32>
    %98 = vector.extract_strided_slice %96 {offsets = [0, 1], sizes = [8, 1], strides = [1, 1]} : vector<8x2xf32> to vector<8x1xf32>
    %99 = tpu.transpose %98, [1, 0] : vector<8x1xf32> -> vector<1x8xf32>
    %100 = vector.broadcast %97 : vector<1x1xf32> to vector<1x8xf32>
    %101 = arith.addf %100, %99 : vector<1x8xf32>
    %102 = vector.extract_strided_slice %11 {offsets = [0, 0], sizes = [1, 8], strides = [1, 1]} : vector<8x8xi1> to vector<1x8xi1>
    %cst_42 = arith.constant 0.000000e+00 : f32
    %103 = vector.broadcast %cst_42 : f32 to vector<1x8xf32>
    %104 = arith.cmpf ogt, %101, %103 : vector<1x8xf32>
    %cst_43 = arith.constant 2.000000e-01 : f32
    %105 = vector.broadcast %cst_43 : f32 to vector<1x8xf32>
    %106 = arith.mulf %105, %101 : vector<1x8xf32>
    %107 = arith.select %104, %101, %106 : vector<1x8xi1>, vector<1x8xf32>
    %cst_44 = arith.constant -9.000000e+15 : f32
    %108 = vector.broadcast %cst_44 : f32 to vector<1x8xf32>
    %109 = arith.select %102, %107, %108 : vector<1x8xi1>, vector<1x8xf32>
    %cst_45 = arith.constant dense<0xFF800000> : vector<1xf32>
    %110 = vector.multi_reduction <maximumf>, %109, %cst_45 [1] : vector<1x8xf32> to vector<1xf32>
    %111 = vector.shape_cast %110 : vector<1xf32> to vector<1x1xf32>
    %112 = vector.broadcast %111 : vector<1x1xf32> to vector<1x8xf32>
    %113 = arith.subf %109, %112 : vector<1x8xf32>
    %114 = math.exp %113 : vector<1x8xf32>
    %cst_46 = arith.constant dense<0.000000e+00> : vector<1xf32>
    %115 = vector.multi_reduction <add>, %114, %cst_46 [1] : vector<1x8xf32> to vector<1xf32>
    %116 = vector.shape_cast %115 : vector<1xf32> to vector<1x1xf32>
    %117 = tpu.reciprocal %116 {approx = true} : vector<1x1xf32> -> vector<1x1xf32>
    %118 = vector.broadcast %117 : vector<1x1xf32> to vector<1x8xf32>
    %119 = arith.mulf %114, %118 : vector<1x8xf32>
    %120 = arith.truncf %119 : vector<1x8xf32> to vector<1x8xbf16>
    %cst_47 = arith.constant dense<0.000000e+00> : vector<1x4xf32>
    %121 = tpu.matmul %120, %94, %cst_47 {dimension_numbers = #tpu.dot_dimension_numbers<[1], [0], [0], [1], [0, 0, 1, 1], [], []>} : vector<1x8xbf16>, vector<8x4xbf16>, vector<1x4xf32> -> vector<1x4xf32>
    %cst_48 = arith.constant 0.000000e+00 : f32
    %122 = vector.broadcast %cst_48 : f32 to vector<1x4xf32>
    %123 = arith.cmpf ogt, %121, %122 : vector<1x4xf32>
    %cst_49 = arith.constant 0.000000e+00 : f32
    %124 = vector.broadcast %cst_49 : f32 to vector<1x4xf32>
    %125 = arith.minimumf %121, %124 : vector<1x4xf32>
    %126 = math.exp %125 : vector<1x4xf32>
    %cst_50 = arith.constant 1.000000e+00 : f32
    %127 = vector.broadcast %cst_50 : f32 to vector<1x4xf32>
    %128 = arith.subf %126, %127 : vector<1x4xf32>
    %129 = arith.select %123, %121, %128 : vector<1x4xi1>, vector<1x4xf32>
    %c0_51 = arith.constant 0 : index
    %c0_52 = arith.constant 0 : index
    %c0_53 = arith.constant 0 : index
    %130 = vector.load %arg8[%c0_51, %c0_52, %c0_53] : memref<2x1x4xf32, #tpu.memory_space<vmem>>, vector<1x1x4xf32>
    %131 = vector.shape_cast %130 : vector<1x1x4xf32> to vector<1x4xf32>
    %132 = vector.shape_cast %129 : vector<1x4xf32> to vector<1x1x4xf32>
    tpu.vector_store %arg8[%c0_51, %c0_52, %c0_53], %132 {strides = array<i32>} : memref<2x1x4xf32, #tpu.memory_space<vmem>>, vector<1x1x4xf32>,
    %c1 = arith.constant 1 : index
    %c0_54 = arith.constant 0 : index
    %c0_55 = arith.constant 0 : index
    %133 = vector.load %arg2[%c1, %c0_54, %c0_55] : memref<2x8x8xi8, #tpu.memory_space<vmem>>, vector<1x8x8xi8>
    %134 = vector.shape_cast %133 : vector<1x8x8xi8> to vector<8x8xi8>
    %135 = arith.extsi %134 : vector<8x8xi8> to vector<8x8xi32>
    %c0_i32_56 = arith.constant 0 : i32
    %136 = vector.broadcast %c0_i32_56 : i32 to vector<8x8xi32>
    %137 = arith.cmpi sgt, %135, %136 : vector<8x8xi32>
    %138 = vector.extract_strided_slice %6 {offsets = [1, 0, 0], sizes = [1, 8, 16], strides = [1, 1, 1]} : vector<2x8x16xbf16> to vector<1x8x16xbf16>
    %139 = vector.shape_cast %138 : vector<1x8x16xbf16> to vector<8x16xbf16>
    %c0_57 = arith.constant 0 : index
    %c0_58 = arith.constant 0 : index
    %140 = vector.load %arg4[%c0_57, %c0_58] : memref<16x4xbf16, #tpu.memory_space<vmem>>, vector<16x4xbf16>
    %cst_59 = arith.constant dense<0.000000e+00> : vector<8x4xf32>
    %141 = tpu.matmul %139, %140, %cst_59 {dimension_numbers = #tpu.dot_dimension_numbers<[1], [0], [0], [1], [0, 0, 1, 1], [], []>} : vector<8x16xbf16>, vector<16x4xbf16>, vector<8x4xf32> -> vector<8x4xf32>
    %142 = vector.extract_strided_slice %141 {offsets = [0, 2], sizes = [8, 1], strides = [1, 1]} : vector<8x4xf32> to vector<8x1xf32>
    %143 = tpu.transpose %142, [1, 0] : vector<8x1xf32> -> vector<1x8xf32>
    %144 = vector.extract_strided_slice %141 {offsets = [0, 0], sizes = [8, 1], strides = [1, 1]} : vector<8x4xf32> to vector<8x1xf32>
    %145 = vector.broadcast %144 : vector<8x1xf32> to vector<8x8xf32>
    %146 = vector.broadcast %143 : vector<1x8xf32> to vector<8x8xf32>
    %147 = arith.addf %145, %146 : vector<8x8xf32>
    %cst_60 = arith.constant 0.000000e+00 : f32
    %148 = vector.broadcast %cst_60 : f32 to vector<8x8xf32>
    %149 = arith.cmpf ogt, %147, %148 : vector<8x8xf32>
    %cst_61 = arith.constant 2.000000e-01 : f32
    %150 = vector.broadcast %cst_61 : f32 to vector<8x8xf32>
    %151 = arith.mulf %150, %147 : vector<8x8xf32>
    %152 = arith.select %149, %147, %151 : vector<8x8xi1>, vector<8x8xf32>
    %cst_62 = arith.constant -9.000000e+15 : f32
    %153 = vector.broadcast %cst_62 : f32 to vector<8x8xf32>
    %154 = arith.select %137, %152, %153 : vector<8x8xi1>, vector<8x8xf32>
    %cst_63 = arith.constant dense<0xFF800000> : vector<8xf32>
    %155 = vector.multi_reduction <maximumf>, %154, %cst_63 [1] : vector<8x8xf32> to vector<8xf32>
    %156 = vector.shape_cast %155 : vector<8xf32> to vector<8x1xf32>
    %157 = vector.broadcast %156 : vector<8x1xf32> to vector<8x8xf32>
    %158 = arith.subf %154, %157 : vector<8x8xf32>
    %159 = math.exp %158 : vector<8x8xf32>
    %cst_64 = arith.constant dense<0.000000e+00> : vector<8xf32>
    %160 = vector.multi_reduction <add>, %159, %cst_64 [1] : vector<8x8xf32> to vector<8xf32>
    %161 = vector.shape_cast %160 : vector<8xf32> to vector<8x1xf32>
    %162 = tpu.reciprocal %161 {approx = true} : vector<8x1xf32> -> vector<8x1xf32>
    %163 = vector.broadcast %162 : vector<8x1xf32> to vector<8x8xf32>
    %164 = arith.mulf %159, %163 : vector<8x8xf32>
    %165 = arith.truncf %164 : vector<8x8xf32> to vector<8x8xbf16>
    %166 = vector.extract_strided_slice %139 {offsets = [0, 0], sizes = [8, 8], strides = [1, 1]} : vector<8x16xbf16> to vector<8x8xbf16>
    %cst_65 = arith.constant dense<0.000000e+00> : vector<8x8xf32>
    %167 = tpu.matmul %165, %166, %cst_65 {dimension_numbers = #tpu.dot_dimension_numbers<[1], [0], [0], [1], [0, 0, 1, 1], [], []>} : vector<8x8xbf16>, vector<8x8xbf16>, vector<8x8xf32> -> vector<8x8xf32>
    %cst_66 = arith.constant 0.000000e+00 : f32
    %168 = vector.broadcast %cst_66 : f32 to vector<8x8xf32>
    %169 = arith.cmpf ogt, %167, %168 : vector<8x8xf32>
    %cst_67 = arith.constant 0.000000e+00 : f32
    %170 = vector.broadcast %cst_67 : f32 to vector<8x8xf32>
    %171 = arith.minimumf %167, %170 : vector<8x8xf32>
    %172 = math.exp %171 : vector<8x8xf32>
    %cst_68 = arith.constant 1.000000e+00 : f32
    %173 = vector.broadcast %cst_68 : f32 to vector<8x8xf32>
    %174 = arith.subf %172, %173 : vector<8x8xf32>
    %175 = arith.select %169, %167, %174 : vector<8x8xi1>, vector<8x8xf32>
    %c0_69 = arith.constant 0 : index
    %c0_70 = arith.constant 0 : index
    %176 = vector.load %arg9[%c0_69, %c0_70] : memref<8x16xf32, #tpu.memory_space<vmem>>, vector<8x8xf32>
    tpu.vector_store %arg9[%c0_69, %c0_70], %175 {strides = array<i32>} : memref<8x16xf32, #tpu.memory_space<vmem>>, vector<8x8xf32>,
    %177 = vector.extract_strided_slice %141 {offsets = [0, 3], sizes = [8, 1], strides = [1, 1]} : vector<8x4xf32> to vector<8x1xf32>
    %178 = tpu.transpose %177, [1, 0] : vector<8x1xf32> -> vector<1x8xf32>
    %179 = vector.extract_strided_slice %141 {offsets = [0, 1], sizes = [8, 1], strides = [1, 1]} : vector<8x4xf32> to vector<8x1xf32>
    %180 = vector.broadcast %179 : vector<8x1xf32> to vector<8x8xf32>
    %181 = vector.broadcast %178 : vector<1x8xf32> to vector<8x8xf32>
    %182 = arith.addf %180, %181 : vector<8x8xf32>
    %cst_71 = arith.constant 0.000000e+00 : f32
    %183 = vector.broadcast %cst_71 : f32 to vector<8x8xf32>
    %184 = arith.cmpf ogt, %182, %183 : vector<8x8xf32>
    %cst_72 = arith.constant 2.000000e-01 : f32
    %185 = vector.broadcast %cst_72 : f32 to vector<8x8xf32>
    %186 = arith.mulf %185, %182 : vector<8x8xf32>
    %187 = arith.select %184, %182, %186 : vector<8x8xi1>, vector<8x8xf32>
    %cst_73 = arith.constant -9.000000e+15 : f32
    %188 = vector.broadcast %cst_73 : f32 to vector<8x8xf32>
    %189 = arith.select %137, %187, %188 : vector<8x8xi1>, vector<8x8xf32>
    %cst_74 = arith.constant dense<0xFF800000> : vector<8xf32>
    %190 = vector.multi_reduction <maximumf>, %189, %cst_74 [1] : vector<8x8xf32> to vector<8xf32>
    %191 = vector.shape_cast %190 : vector<8xf32> to vector<8x1xf32>
    %192 = vector.broadcast %191 : vector<8x1xf32> to vector<8x8xf32>
    %193 = arith.subf %189, %192 : vector<8x8xf32>
    %194 = math.exp %193 : vector<8x8xf32>
    %cst_75 = arith.constant dense<0.000000e+00> : vector<8xf32>
    %195 = vector.multi_reduction <add>, %194, %cst_75 [1] : vector<8x8xf32> to vector<8xf32>
    %196 = vector.shape_cast %195 : vector<8xf32> to vector<8x1xf32>
    %197 = tpu.reciprocal %196 {approx = true} : vector<8x1xf32> -> vector<8x1xf32>
    %198 = vector.broadcast %197 : vector<8x1xf32> to vector<8x8xf32>
    %199 = arith.mulf %194, %198 : vector<8x8xf32>
    %200 = arith.truncf %199 : vector<8x8xf32> to vector<8x8xbf16>
    %201 = vector.extract_strided_slice %139 {offsets = [0, 8], sizes = [8, 8], strides = [1, 1]} : vector<8x16xbf16> to vector<8x8xbf16>
    %cst_76 = arith.constant dense<0.000000e+00> : vector<8x8xf32>
    %202 = tpu.matmul %200, %201, %cst_76 {dimension_numbers = #tpu.dot_dimension_numbers<[1], [0], [0], [1], [0, 0, 1, 1], [], []>} : vector<8x8xbf16>, vector<8x8xbf16>, vector<8x8xf32> -> vector<8x8xf32>
    %cst_77 = arith.constant 0.000000e+00 : f32
    %203 = vector.broadcast %cst_77 : f32 to vector<8x8xf32>
    %204 = arith.cmpf ogt, %202, %203 : vector<8x8xf32>
    %cst_78 = arith.constant 0.000000e+00 : f32
    %205 = vector.broadcast %cst_78 : f32 to vector<8x8xf32>
    %206 = arith.minimumf %202, %205 : vector<8x8xf32>
    %207 = math.exp %206 : vector<8x8xf32>
    %cst_79 = arith.constant 1.000000e+00 : f32
    %208 = vector.broadcast %cst_79 : f32 to vector<8x8xf32>
    %209 = arith.subf %207, %208 : vector<8x8xf32>
    %210 = arith.select %204, %202, %209 : vector<8x8xi1>, vector<8x8xf32>
    %c0_80 = arith.constant 0 : index
    %c8_81 = arith.constant 8 : index
    %211 = vector.load %arg9[%c0_80, %c8_81] : memref<8x16xf32, #tpu.memory_space<vmem>>, vector<8x8xf32>
    tpu.vector_store %arg9[%c0_80, %c8_81], %210 {strides = array<i32>} : memref<8x16xf32, #tpu.memory_space<vmem>>, vector<8x8xf32>,
    %c0_82 = arith.constant 0 : index
    %c0_83 = arith.constant 0 : index
    %212 = vector.load %arg9[%c0_82, %c0_83] : memref<8x16xf32, #tpu.memory_space<vmem>>, vector<8x16xf32>
    %213 = vector.extract_strided_slice %212 {offsets = [0, 0], sizes = [1, 16], strides = [1, 1]} : vector<8x16xf32> to vector<1x16xf32>
    %c1_84 = arith.constant 1 : index
    %c0_85 = arith.constant 0 : index
    %c0_86 = arith.constant 0 : index
    %214 = vector.load %arg7[%c1_84, %c0_85, %c0_86] : memref<2x1x16xf32, #tpu.memory_space<vmem>>, vector<1x1x16xf32>
    %215 = vector.shape_cast %214 : vector<1x1x16xf32> to vector<1x16xf32>
    %216 = vector.shape_cast %213 : vector<1x16xf32> to vector<1x1x16xf32>
    tpu.vector_store %arg7[%c1_84, %c0_85, %c0_86], %216 {strides = array<i32>} : memref<2x1x16xf32, #tpu.memory_space<vmem>>, vector<1x1x16xf32>,
    %217 = arith.truncf %212 : vector<8x16xf32> to vector<8x16xbf16>
    %c0_87 = arith.constant 0 : index
    %c0_88 = arith.constant 0 : index
    %218 = vector.load %arg5[%c0_87, %c0_88] : memref<16x4xbf16, #tpu.memory_space<vmem>>, vector<16x4xbf16>
    %cst_89 = arith.constant dense<0.000000e+00> : vector<8x4xf32>
    %219 = tpu.matmul %217, %218, %cst_89 {dimension_numbers = #tpu.dot_dimension_numbers<[1], [0], [0], [1], [0, 0, 1, 1], [], []>} : vector<8x16xbf16>, vector<16x4xbf16>, vector<8x4xf32> -> vector<8x4xf32>
    %220 = arith.truncf %219 : vector<8x4xf32> to vector<8x4xbf16>
    %c0_90 = arith.constant 0 : index
    %c0_91 = arith.constant 0 : index
    %221 = vector.load %arg6[%c0_90, %c0_91] : memref<4x2xbf16, #tpu.memory_space<vmem>>, vector<4x2xbf16>
    %cst_92 = arith.constant dense<0.000000e+00> : vector<8x2xf32>
    %222 = tpu.matmul %220, %221, %cst_92 {dimension_numbers = #tpu.dot_dimension_numbers<[1], [0], [0], [1], [0, 0, 1, 1], [], []>} : vector<8x4xbf16>, vector<4x2xbf16>, vector<8x2xf32> -> vector<8x2xf32>
    %223 = vector.extract_strided_slice %222 {offsets = [0, 0], sizes = [1, 1], strides = [1, 1]} : vector<8x2xf32> to vector<1x1xf32>
    %224 = vector.extract_strided_slice %222 {offsets = [0, 1], sizes = [8, 1], strides = [1, 1]} : vector<8x2xf32> to vector<8x1xf32>
    %225 = tpu.transpose %224, [1, 0] : vector<8x1xf32> -> vector<1x8xf32>
    %226 = vector.broadcast %223 : vector<1x1xf32> to vector<1x8xf32>
    %227 = arith.addf %226, %225 : vector<1x8xf32>
    %228 = vector.extract_strided_slice %137 {offsets = [0, 0], sizes = [1, 8], strides = [1, 1]} : vector<8x8xi1> to vector<1x8xi1>
    %cst_93 = arith.constant 0.000000e+00 : f32
    %229 = vector.broadcast %cst_93 : f32 to vector<1x8xf32>
    %230 = arith.cmpf ogt, %227, %229 : vector<1x8xf32>
    %cst_94 = arith.constant 2.000000e-01 : f32
    %231 = vector.broadcast %cst_94 : f32 to vector<1x8xf32>
    %232 = arith.mulf %231, %227 : vector<1x8xf32>
    %233 = arith.select %230, %227, %232 : vector<1x8xi1>, vector<1x8xf32>
    %cst_95 = arith.constant -9.000000e+15 : f32
    %234 = vector.broadcast %cst_95 : f32 to vector<1x8xf32>
    %235 = arith.select %228, %233, %234 : vector<1x8xi1>, vector<1x8xf32>
    %cst_96 = arith.constant dense<0xFF800000> : vector<1xf32>
    %236 = vector.multi_reduction <maximumf>, %235, %cst_96 [1] : vector<1x8xf32> to vector<1xf32>
    %237 = vector.shape_cast %236 : vector<1xf32> to vector<1x1xf32>
    %238 = vector.broadcast %237 : vector<1x1xf32> to vector<1x8xf32>
    %239 = arith.subf %235, %238 : vector<1x8xf32>
    %240 = math.exp %239 : vector<1x8xf32>
    %cst_97 = arith.constant dense<0.000000e+00> : vector<1xf32>
    %241 = vector.multi_reduction <add>, %240, %cst_97 [1] : vector<1x8xf32> to vector<1xf32>
    %242 = vector.shape_cast %241 : vector<1xf32> to vector<1x1xf32>
    %243 = tpu.reciprocal %242 {approx = true} : vector<1x1xf32> -> vector<1x1xf32>
    %244 = vector.broadcast %243 : vector<1x1xf32> to vector<1x8xf32>
    %245 = arith.mulf %240, %244 : vector<1x8xf32>
    %246 = arith.truncf %245 : vector<1x8xf32> to vector<1x8xbf16>
    %cst_98 = arith.constant dense<0.000000e+00> : vector<1x4xf32>
    %247 = tpu.matmul %246, %220, %cst_98 {dimension_numbers = #tpu.dot_dimension_numbers<[1], [0], [0], [1], [0, 0, 1, 1], [], []>} : vector<1x8xbf16>, vector<8x4xbf16>, vector<1x4xf32> -> vector<1x4xf32>
    %cst_99 = arith.constant 0.000000e+00 : f32
    %248 = vector.broadcast %cst_99 : f32 to vector<1x4xf32>
    %249 = arith.cmpf ogt, %247, %248 : vector<1x4xf32>
    %cst_100 = arith.constant 0.000000e+00 : f32
    %250 = vector.broadcast %cst_100 : f32 to vector<1x4xf32>
    %251 = arith.minimumf %247, %250 : vector<1x4xf32>
    %252 = math.exp %251 : vector<1x4xf32>
    %cst_101 = arith.constant 1.000000e+00 : f32
    %253 = vector.broadcast %cst_101 : f32 to vector<1x4xf32>
    %254 = arith.subf %252, %253 : vector<1x4xf32>
    %255 = arith.select %249, %247, %254 : vector<1x4xi1>, vector<1x4xf32>
    %c1_102 = arith.constant 1 : index
    %c0_103 = arith.constant 0 : index
    %c0_104 = arith.constant 0 : index
    %256 = vector.load %arg8[%c1_102, %c0_103, %c0_104] : memref<2x1x4xf32, #tpu.memory_space<vmem>>, vector<1x1x4xf32>
    %257 = vector.shape_cast %256 : vector<1x1x4xf32> to vector<1x4xf32>
    %258 = vector.shape_cast %255 : vector<1x4xf32> to vector<1x1x4xf32>
    tpu.vector_store %arg8[%c1_102, %c0_103, %c0_104], %258 {strides = array<i32>} : memref<2x1x4xf32, #tpu.memory_space<vmem>>, vector<1x1x4xf32>,
    return
  }
  func.func @transform_0(%arg0: i32) -> (i32, i32, i32) {
    %c0_i32 = arith.constant 0 : i32
    %c0_i32_0 = arith.constant 0 : i32
    %c0_i32_1 = arith.constant 0 : i32
    return %arg0, %c0_i32, %c0_i32_0 : i32, i32, i32
  }
  func.func @transform_1(%arg0: i32) -> (i32, i32, i32) {
    %c0_i32 = arith.constant 0 : i32
    %c0_i32_0 = arith.constant 0 : i32
    %c0_i32_1 = arith.constant 0 : i32
    return %arg0, %c0_i32, %c0_i32_0 : i32, i32, i32
  }
  func.func @transform_2(%arg0: i32) -> (i32, i32) {
    %c0_i32 = arith.constant 0 : i32
    %c0_i32_0 = arith.constant 0 : i32
    %c0_i32_1 = arith.constant 0 : i32
    return %c0_i32, %c0_i32_0 : i32, i32
  }
  func.func @transform_3(%arg0: i32) -> (i32, i32) {
    %c0_i32 = arith.constant 0 : i32
    %c0_i32_0 = arith.constant 0 : i32
    %c0_i32_1 = arith.constant 0 : i32
    return %c0_i32, %c0_i32_0 : i32, i32
  }
  func.func @transform_4(%arg0: i32) -> (i32, i32) {
    %c0_i32 = arith.constant 0 : i32
    %c0_i32_0 = arith.constant 0 : i32
    %c0_i32_1 = arith.constant 0 : i32
    return %c0_i32, %c0_i32_0 : i32, i32
  }
  func.func @transform_5(%arg0: i32) -> (i32, i32) {
    %c0_i32 = arith.constant 0 : i32
    %c0_i32_0 = arith.constant 0 : i32
    %c0_i32_1 = arith.constant 0 : i32
    return %c0_i32, %c0_i32_0 : i32, i32
  }
  func.func @transform_6(%arg0: i32) -> (i32, i32, i32) {
    %c0_i32 = arith.constant 0 : i32
    %c0_i32_0 = arith.constant 0 : i32
    %c0_i32_1 = arith.constant 0 : i32
    return %arg0, %c0_i32, %c0_i32_0 : i32, i32, i32
  }
  func.func @transform_7(%arg0: i32) -> (i32, i32, i32) {
    %c0_i32 = arith.constant 0 : i32
    %c0_i32_0 = arith.constant 0 : i32
    %c0_i32_1 = arith.constant 0 : i32
    return %arg0, %c0_i32, %c0_i32_0 : i32, i32, i32
  }
}

</mosaic_0001>

<llo_original>
// kernel: tpu_custom_call.1
$region0: #{tpu_custom_call.1}
  #allocation0 [shape = 'u32[]', space=smem, size = 0x4, offset = 0x4, fixed_abs, tag = 'smem constant byte address 0x4 - core index']
  #allocation1 [shape = 'u32[72,128]{1,0:T(1,128)}', space=vmem, size = 0x9000, scoped, tag = 'internal scratch']
  #allocation2 [shape = 'f32[8,16]{1,0:T(8,128)}', space=vmem, size = 0x1000, scoped, tag = 'scratch operand']
  %s0 = inlined_call_operand.vmem [shape: f32[2,8,16], index: 0, kind: input, shape index: {}]
  %s1 = inlined_call_operand.hbm [shape: s8[2,8,8], index: 1, kind: input, shape index: {}]
  %s2 = inlined_call_operand.hbm [shape: bf16[16,16], index: 2, kind: input, shape index: {}]
  %s3 = inlined_call_operand.vmem [shape: bf16[16,4], index: 3, kind: input, shape index: {}]
  %s4 = inlined_call_operand.vmem [shape: bf16[16,4], index: 4, kind: input, shape index: {}]
  %s5 = inlined_call_operand.vmem [shape: bf16[4,2], index: 5, kind: input, shape index: {}]
  %s6 = inlined_call_operand.hbm [shape: f32[2,1,16], index: 6, kind: output, shape index: {0}]
  %s7 = inlined_call_operand.hbm [shape: f32[2,1,4], index: 7, kind: output, shape index: {1}]
  %8 = xla_tuple %s6, %s7
  %s9 = sld [smem:[#allocation0]]
  $region50: #{tpu_custom_call.1} parent=0
    _
  %s11 = ssub.s32 1, %s9
  %s12 = scalar_select 0, %s11, %s9
  $region1: #{tpu_custom_call.1} parent=0
    #allocation3 [shape = 'u8[2048]{0}', space=vmem, size = 0x800, scoped, tag = 'input window, operand 1, single buffered']
    #allocation4 [shape = 's32[1]{0}', space=sflag, size = 0x4, scoped, tag = 'scoped memory for tpu_custom_call.1']
    #allocation5 [shape = 's32[1]{0}', space=sflag, size = 0x4, scoped, tag = 'scoped memory for tpu_custom_call.1']
    #allocation6 [shape = 'u8[4096]{0}', space=vmem, size = 0x1000, scoped, tag = 'input window, operand 2, single buffered']
    #allocation7 [shape = 's32[1]{0}', space=sflag, size = 0x4, scoped, tag = 'scoped memory for tpu_custom_call.1']
    #allocation8 [shape = 'u8[1024]{0}', space=vmem, size = 0x400, scoped, tag = 'output window, operand 0, single buffered']
    #allocation9 [shape = 'u8[1024]{0}', space=vmem, size = 0x400, scoped, tag = 'output window, operand 1, single buffered']
    #allocation10 [shape = 's32[1]{0}', space=sflag, size = 0x4, scoped, tag = 'scoped memory for tpu_custom_call.1']
    %13 = vsyncpa [#allocation4], 0
    %14 = vsyncpa [#allocation7], 0
    %15 = vsyncpa [#allocation5], 0
    %16 = vsyncpa [#allocation10], 0
    // Predicated region
    $region2: #{tpu_custom_call.1} parent=1 // pred_check
      _
    $region3: #{tpu_custom_call.1} parent=1 // pred_check_branch
      %18 = sbr.rel (0) target = $region5
    $region4: #{tpu_custom_call.1} parent=1 // pred_region
      _
    $region5: #{tpu_custom_call.1} parent=1 // pred_fallthru
      _
    // Predicated region
    $region6: #{tpu_custom_call.1} parent=1 // pred_check
      _
    $region7: #{tpu_custom_call.1} parent=1 // pred_check_branch
      %20 = sbr.rel (0) target = $region9
    $region8: #{tpu_custom_call.1} parent=1 // pred_region
      %22 = vsyncadd [#allocation4], 0
      %s23 = sshll.u32 %s1, 4
      %s24 = int_to_ptr.hbm [resolvable:$true] %s23
      %s25 = sshll.u32 [#allocation3], 4
      %s26 = int_to_ptr.vmem [resolvable:$true] %s25
      %31 = dma.hbm_to_vmem [thread:$0]  %s24, 64, %s26, [#allocation4], 32, 32, 2
    $region9: #{tpu_custom_call.1} parent=1 // pred_fallthru
      _
    // Predicated region
    $region10: #{tpu_custom_call.1} parent=1 // pred_check
      _
    $region11: #{tpu_custom_call.1} parent=1 // pred_check_branch
      %33 = sbr.rel (0) target = $region13
    $region12: #{tpu_custom_call.1} parent=1 // pred_region
      %35 = vsyncadd [#allocation7], 0
      %s36 = sshll.u32 %s2, 4
      %s37 = int_to_ptr.hbm [resolvable:$true] %s36
      %s38 = sshll.u32 [#allocation6], 4
      %s39 = int_to_ptr.vmem [resolvable:$true] %s38
      %44 = dma.hbm_to_vmem [thread:$0]  %s37, 128, %s39, [#allocation7], 64, 64, 4
    $region13: #{tpu_custom_call.1} parent=1 // pred_fallthru
      _
    // Predicated region
    $region14: #{tpu_custom_call.1} parent=1 // pred_check
      _
    $region15: #{tpu_custom_call.1} parent=1 // pred_check_branch
      %46 = sbr.rel (0) target = $region17
    $region16: #{tpu_custom_call.1} parent=1 // pred_region
      _
    $region17: #{tpu_custom_call.1} parent=1 // pred_fallthru
      _
    // Predicated region
    $region18: #{tpu_custom_call.1} parent=1 // pred_check
      _
    $region19: #{tpu_custom_call.1} parent=1 // pred_check_branch
      %48 = sbr.rel (0) target = $region21
    $region20: #{tpu_custom_call.1} parent=1 // pred_region
      _
    $region21: #{tpu_custom_call.1} parent=1 // pred_fallthru
      _
    // Predicated region
    $region22: #{tpu_custom_call.1} parent=1 // pred_check
      _
    $region23: #{tpu_custom_call.1} parent=1 // pred_check_branch
      %50 = sbr.rel (0) target = $region25
    $region24: #{tpu_custom_call.1} parent=1 // pred_region
      _
    $region25: #{tpu_custom_call.1} parent=1 // pred_fallthru
      _
    // Predicated region
    $region26: #{tpu_custom_call.1} parent=1 // pred_check
      _
    $region27: #{tpu_custom_call.1} parent=1 // pred_check_branch
      %52 = sbr.rel (0) target = $region29
    $region28: #{tpu_custom_call.1} parent=1 // pred_region
      %54 = dma.done [#allocation4], 64
    $region29: #{tpu_custom_call.1} parent=1 // pred_fallthru
      _
    // Predicated region
    $region30: #{tpu_custom_call.1} parent=1 // pred_check
      _
    $region31: #{tpu_custom_call.1} parent=1 // pred_check_branch
      %56 = sbr.rel (0) target = $region33
    $region32: #{tpu_custom_call.1} parent=1 // pred_region
      %58 = dma.done [#allocation7], 128
    $region33: #{tpu_custom_call.1} parent=1 // pred_fallthru
      _
    %v60 = vld [vmem:[%s0] sm:$0xff]
    %v61 = vld [vmem:[%s0 + $0x8] sm:$0xff]
    %v62 = vpack.c.bf16 %v61, %v60
    %v63 = vld [vmem:[#allocation6] sm:$0xf]
    %v64 = vld [vmem:[#allocation6 + $0x4] sm:$0xf]
    %v67 = vunpack.c.l.b16 %v63
    %v68 = vunpack.c.l.b16 %v64
    %v69 = vpack.c.b16 %v68, %v67
    %vm71 = vcmask 130048
    %v73 = vsel %vm71, %v62, 0
    %75 = vmatpush.bf16.msra.mxu0 0
    %76 = vmatpush.bf16.msra.mxu0 0
    %77 = vmatpush.bf16.msra.mxu0 0
    %78 = vmatpush.bf16.msra.mxu0 0
    %79 = vmatpush.bf16.msra.mxu0 0
    %80 = vmatpush.bf16.msra.mxu0 0
    %81 = vmatpush.bf16.msra.mxu0 0
    %82 = vmatpush.bf16.msra.mxu0 %v69
    %83 = vmatmul.bf16.gmra.mxu0 %v73
    %v84 = vpop.f32.mrf.mxu0
    %v85 = vadd.f32 0.0, %v84
    %v86 = vpop.f32.mrf.mxu0
    %v87 = vadd.f32 0.0, %v86
    %88 = vdwg.mxu0
    %v89 = vpack.c.bf16 %v85, %v85
    %v90 = vpack.c.bf16 %v87, %v87
    %v91 = vld [vmem:[#allocation3] sm:$0x3]
    %v92 = vunpack.c.0.s8 %v91
    %vm93 = vcmp.gt.s32.totalorder %v92, 0
    %v94 = vld [vmem:[%s3] sm:$0xf]
    %v95 = vld [vmem:[%s3 + $0x4] sm:$0xf]
    %v98 = vunpack.c.l.b16 %v94
    %v99 = vunpack.c.l.b16 %v95
    %v100 = vpack.c.b16 %v99, %v98
    %v103 = vsel %vm71, %v89, 0
    %105 = vmatpush.bf16.msra.mxu0 0
    %106 = vmatpush.bf16.msra.mxu0 0
    %107 = vmatpush.bf16.msra.mxu0 0
    %108 = vmatpush.bf16.msra.mxu0 0
    %109 = vmatpush.bf16.msra.mxu0 0
    %110 = vmatpush.bf16.msra.mxu0 0
    %111 = vmatpush.bf16.msra.mxu0 0
    %112 = vmatpush.bf16.msra.mxu0 %v100
    %113 = vmatmul.bf16.gmra.mxu0 %v103
    %v114 = vpop.f32.mrf.mxu0
    %v115 = vadd.f32 0.0, %v114
    %v116 = vpop.f32.mrf.mxu0
    %117 = vdwg.mxu0
    %119 = vrot.lane.b32.xlu0 %v115, 126
    %v120 = vpop.permute.xlu0 %119
    %122 = vxpose.xlu0.b32.start [1/16] %v120, 128
    %123 = vxpose.xlu0.b32.cont [2/16] 0.0, 128
    %124 = vxpose.xlu0.b32.cont [3/16] 0.0, 128
    %125 = vxpose.xlu0.b32.cont [4/16] 0.0, 128
    %126 = vxpose.xlu0.b32.cont [5/16] 0.0, 128
    %127 = vxpose.xlu0.b32.cont [6/16] 0.0, 128
    %128 = vxpose.xlu0.b32.cont [7/16] 0.0, 128
    %129 = vxpose.xlu0.b32.cont [8/16] 0.0, 128
    %130 = vxpose.xlu0.b32.cont [9/16] 0.0, 128
    %131 = vxpose.xlu0.b32.cont [10/16] 0.0, 128
    %132 = vxpose.xlu0.b32.cont [11/16] 0.0, 128
    %133 = vxpose.xlu0.b32.cont [12/16] 0.0, 128
    %134 = vxpose.xlu0.b32.cont [13/16] 0.0, 128
    %135 = vxpose.xlu0.b32.cont [14/16] 0.0, 128
    %136 = vxpose.xlu0.b32.cont [15/16] 0.0, 128
    %137 = vxpose.xlu0.b32.end [16/16] 0.0, 128
    %v138 = vpop.trf.xlu0
    %v139 = vpop.trf.xlu0
    %v140 = vpop.trf.xlu0
    %v141 = vpop.trf.xlu0
    %v142 = vpop.trf.xlu0
    %v143 = vpop.trf.xlu0
    %v144 = vpop.trf.xlu0
    %v145 = vpop.trf.xlu0
    %v146 = vpop.trf.xlu0
    %v147 = vpop.trf.xlu0
    %v148 = vpop.trf.xlu0
    %v149 = vpop.trf.xlu0
    %v150 = vpop.trf.xlu0
    %v151 = vpop.trf.xlu0
    %v152 = vpop.trf.xlu0
    %v153 = vpop.trf.xlu0
    %154 = vset.pattern.permute.xlu0 0
    %155 = vperm.xlu0 %154, %v115
    %v156 = vpop.permute.xlu0 %155
    %v158 = vperm.slane %v138, 0
    %v159 = vadd.f32 %v156, %v158
    %vm160 = vcmp.gt.f32.partialorder %v159, 0.0
    %v161 = vmul.f32 %v159, 0.2
    %v162 = vsel %vm160, %v159, %v161
    %v163 = vsel %vm93, %v162, -9e+15
    %vm164 = vcmask 64512
    %v165 = vsel %vm164, %v163, -inf
    %166 = vmax.xlane.f32.xlu0 %v165
    %v167 = vpop.xlane.xlu0 %166
    %v168 = vsub.f32 %v163, %v167
    %v169 = vmul.f32 %v168, 1.442695
    %v170 = vpow.pop %v169
    %v171 = vsel %vm164, %v170, 0.0
    %172 = vadd.xlane.f32.xlu0 %v171
    %v173 = vpop.xlane.xlu0 %172
    %v174 = vrcp.pop %v173
    %v175 = vmul.f32 %v170, %v174
    %v176 = vpack.c.bf16 %v175, %v175
    %v178 = vsel %vm164, %v176, 0
    %vm180 = vcmask 1043456
    %v181 = vsel %vm180, %v89, 0
    %183 = vmatpush.bf16.msra.mxu0 0
    %184 = vmatpush.bf16.msra.mxu0 0
    %185 = vmatpush.bf16.msra.mxu0 0
    %186 = vmatpush.bf16.msra.mxu0 0
    %187 = vmatpush.bf16.msra.mxu0 0
    %188 = vmatpush.bf16.msra.mxu0 0
    %189 = vmatpush.bf16.msra.mxu0 0
    %190 = vmatpush.bf16.msra.mxu0 %v181
    %191 = vmatmul.bf16.gmra.mxu0 %v178
    %v192 = vpop.f32.mrf.mxu0
    %v193 = vadd.f32 0.0, %v192
    %v194 = vpop.f32.mrf.mxu0
    %195 = vdwg.mxu0
    %vm196 = vcmp.gt.f32.partialorder %v193, 0.0
    %v197 = vmin.f32 %v193, 0.0
    %v198 = vmul.f32 %v197, 1.442695
    %v199 = vpow.pop %v198
    %v200 = vsub.f32 %v199, 1.0
    %v201 = vsel %vm196, %v193, %v200
    %202 = vst.msk [vmem:[#allocation2] sm:$0xff] %vm164, %v201
    %203 = vrot.lane.b32.xlu0 %v115, 125
    %v204 = vpop.permute.xlu0 %203
    %206 = vxpose.xlu0.b32.start [1/16] %v204, 128
    %207 = vxpose.xlu0.b32.cont [2/16] 0.0, 128
    %208 = vxpose.xlu0.b32.cont [3/16] 0.0, 128
    %209 = vxpose.xlu0.b32.cont [4/16] 0.0, 128
    %210 = vxpose.xlu0.b32.cont [5/16] 0.0, 128
    %211 = vxpose.xlu0.b32.cont [6/16] 0.0, 128
    %212 = vxpose.xlu0.b32.cont [7/16] 0.0, 128
    %213 = vxpose.xlu0.b32.cont [8/16] 0.0, 128
    %214 = vxpose.xlu0.b32.cont [9/16] 0.0, 128
    %215 = vxpose.xlu0.b32.cont [10/16] 0.0, 128
    %216 = vxpose.xlu0.b32.cont [11/16] 0.0, 128
    %217 = vxpose.xlu0.b32.cont [12/16] 0.0, 128
    %218 = vxpose.xlu0.b32.cont [13/16] 0.0, 128
    %219 = vxpose.xlu0.b32.cont [14/16] 0.0, 128
    %220 = vxpose.xlu0.b32.cont [15/16] 0.0, 128
    %221 = vxpose.xlu0.b32.end [16/16] 0.0, 128
    %v222 = vpop.trf.xlu0
    %v223 = vpop.trf.xlu0
    %v224 = vpop.trf.xlu0
    %v225 = vpop.trf.xlu0
    %v226 = vpop.trf.xlu0
    %v227 = vpop.trf.xlu0
    %v228 = vpop.trf.xlu0
    %v229 = vpop.trf.xlu0
    %v230 = vpop.trf.xlu0
    %v231 = vpop.trf.xlu0
    %v232 = vpop.trf.xlu0
    %v233 = vpop.trf.xlu0
    %v234 = vpop.trf.xlu0
    %v235 = vpop.trf.xlu0
    %v236 = vpop.trf.xlu0
    %v237 = vpop.trf.xlu0
    %238 = vset.pattern.permute.xlu0 1
    %239 = vperm.xlu0 %238, %v115
    %v240 = vpop.permute.xlu0 %239
    %v242 = vperm.slane %v222, 0
    %v243 = vadd.f32 %v240, %v242
    %vm244 = vcmp.gt.f32.partialorder %v243, 0.0
    %v245 = vmul.f32 %v243, 0.2
    %v246 = vsel %vm244, %v243, %v245
    %v247 = vsel %vm93, %v246, -9e+15
    %v248 = vsel %vm164, %v247, -inf
    %249 = vmax.xlane.f32.xlu0 %v248
    %v250 = vpop.xlane.xlu0 %249
    %v251 = vsub.f32 %v247, %v250
    %v252 = vmul.f32 %v251, 1.442695
    %v253 = vpow.pop %v252
    %v254 = vsel %vm164, %v253, 0.0
    %255 = vadd.xlane.f32.xlu0 %v254
    %v256 = vpop.xlane.xlu0 %255
    %v257 = vrcp.pop %v256
    %v258 = vmul.f32 %v253, %v257
    %v259 = vpack.c.bf16 %v258, %v258
    %v261 = vunpack.c.l.b16 %v89
    %v262 = vpack.c.b16 %v261, %v261
    %263 = vrot.lane.b32.xlu0 %v262, 120
    %v264 = vpop.permute.xlu0 %263
    %v266 = vsel %vm164, %v259, 0
    %v269 = vsel %vm180, %v264, 0
    %271 = vmatpush.bf16.msra.mxu0 0
    %272 = vmatpush.bf16.msra.mxu0 0
    %273 = vmatpush.bf16.msra.mxu0 0
    %274 = vmatpush.bf16.msra.mxu0 0
    %275 = vmatpush.bf16.msra.mxu0 0
    %276 = vmatpush.bf16.msra.mxu0 0
    %277 = vmatpush.bf16.msra.mxu0 0
    %278 = vmatpush.bf16.msra.mxu0 %v269
    %279 = vmatmul.bf16.gmra.mxu0 %v266
    %v280 = vpop.f32.mrf.mxu0
    %v281 = vadd.f32 0.0, %v280
    %v282 = vpop.f32.mrf.mxu0
    %283 = vdwg.mxu0
    %vm284 = vcmp.gt.f32.partialorder %v281, 0.0
    %v285 = vmin.f32 %v281, 0.0
    %v286 = vmul.f32 %v285, 1.442695
    %v287 = vpow.pop %v286
    %v288 = vsub.f32 %v287, 1.0
    %v289 = vsel %vm284, %v281, %v288
    %291 = vrot.lane.b32.xlu0 %v289, 8
    %v292 = vpop.permute.xlu0 %291
    %vm294 = vcmask 130112
    %295 = vst.msk [vmem:[#allocation2] sm:$0xff] %vm294, %v292
    %v296 = vld [vmem:[#allocation2] sm:$0xff]
    %vm297 = vcmask 122880
    %298 = vst.msk [vmem:[#allocation8] sm:$0x1] %vm297, %v296
    %v299 = vpack.c.bf16 %v296, %v296
    %v300 = vld [vmem:[%s4] sm:$0xf]
    %v301 = vld [vmem:[%s4 + $0x4] sm:$0xf]
    %v304 = vunpack.c.l.b16 %v300
    %v305 = vunpack.c.l.b16 %v301
    %v306 = vpack.c.b16 %v305, %v304
    %v309 = vsel %vm71, %v299, 0
    %311 = vmatpush.bf16.msra.mxu0 0
    %312 = vmatpush.bf16.msra.mxu0 0
    %313 = vmatpush.bf16.msra.mxu0 0
    %314 = vmatpush.bf16.msra.mxu0 0
    %315 = vmatpush.bf16.msra.mxu0 0
    %316 = vmatpush.bf16.msra.mxu0 0
    %317 = vmatpush.bf16.msra.mxu0 0
    %318 = vmatpush.bf16.msra.mxu0 %v306
    %319 = vmatmul.bf16.gmra.mxu0 %v309
    %v320 = vpop.f32.mrf.mxu0
    %v321 = vadd.f32 0.0, %v320
    %v322 = vpop.f32.mrf.mxu0
    %323 = vdwg.mxu0
    %v324 = vpack.c.bf16 %v321, %v321
    %v325 = vld [vmem:[%s5] sm:$0x3]
    %vm326 = vcmask 31744
    %v328 = vsel %vm326, %v324, 0
    %vm330 = vcmask 1041408
    %v332 = vsel %vm330, %v325, 0
    %334 = vmatpush.bf16.msra.mxu0 0
    %335 = vmatpush.bf16.msra.mxu0 0
    %336 = vmatpush.bf16.msra.mxu0 0
    %337 = vmatpush.bf16.msra.mxu0 0
    %338 = vmatpush.bf16.msra.mxu0 0
    %339 = vmatpush.bf16.msra.mxu0 0
    %340 = vmatpush.bf16.msra.mxu0 0
    %341 = vmatpush.bf16.msra.mxu0 %v332
    %342 = vmatmul.bf16.gmra.mxu0 %v328
    %v343 = vpop.f32.mrf.mxu0
    %v344 = vadd.f32 0.0, %v343
    %v345 = vpop.f32.mrf.mxu0
    %346 = vdwg.mxu0
    %348 = vrot.lane.b32.xlu0 %v344, 127
    %v349 = vpop.permute.xlu0 %348
    %351 = vxpose.xlu0.b32.start [1/16] %v349, 128
    %352 = vxpose.xlu0.b32.cont [2/16] 0.0, 128
    %353 = vxpose.xlu0.b32.cont [3/16] 0.0, 128
    %354 = vxpose.xlu0.b32.cont [4/16] 0.0, 128
    %355 = vxpose.xlu0.b32.cont [5/16] 0.0, 128
    %356 = vxpose.xlu0.b32.cont [6/16] 0.0, 128
    %357 = vxpose.xlu0.b32.cont [7/16] 0.0, 128
    %358 = vxpose.xlu0.b32.cont [8/16] 0.0, 128
    %359 = vxpose.xlu0.b32.cont [9/16] 0.0, 128
    %360 = vxpose.xlu0.b32.cont [10/16] 0.0, 128
    %361 = vxpose.xlu0.b32.cont [11/16] 0.0, 128
    %362 = vxpose.xlu0.b32.cont [12/16] 0.0, 128
    %363 = vxpose.xlu0.b32.cont [13/16] 0.0, 128
    %364 = vxpose.xlu0.b32.cont [14/16] 0.0, 128
    %365 = vxpose.xlu0.b32.cont [15/16] 0.0, 128
    %366 = vxpose.xlu0.b32.end [16/16] 0.0, 128
    %v367 = vpop.trf.xlu0
    %v368 = vpop.trf.xlu0
    %v369 = vpop.trf.xlu0
    %v370 = vpop.trf.xlu0
    %v371 = vpop.trf.xlu0
    %v372 = vpop.trf.xlu0
    %v373 = vpop.trf.xlu0
    %v374 = vpop.trf.xlu0
    %v375 = vpop.trf.xlu0
    %v376 = vpop.trf.xlu0
    %v377 = vpop.trf.xlu0
    %v378 = vpop.trf.xlu0
    %v379 = vpop.trf.xlu0
    %v380 = vpop.trf.xlu0
    %v381 = vpop.trf.xlu0
    %v382 = vpop.trf.xlu0
    %383 = vset.pattern.permute.xlu0 0
    %384 = vperm.xlu0 %383, %v344
    %v385 = vpop.permute.xlu0 %384
    %v387 = vadd.f32 %v385, %v367
    %vm388 = vcmp.gt.f32.partialorder %v387, 0.0
    %v389 = vmul.f32 %v387, 0.2
    %v390 = vsel %vm388, %v387, %v389
    %v391 = vsel %vm93, %v390, -9e+15
    %vm392 = vcmask 57344
    %v393 = vsel %vm392, %v391, -inf
    %394 = vmax.xlane.f32.xlu0 %v393
    %v395 = vpop.xlane.xlu0 %394
    %v396 = vsub.f32 %v391, %v395
    %v397 = vmul.f32 %v396, 1.442695
    %v398 = vpow.pop %v397
    %v399 = vsel %vm392, %v398, 0.0
    %400 = vadd.xlane.f32.xlu0 %v399
    %v401 = vpop.xlane.xlu0 %400
    %v402 = vrcp.pop %v401
    %v403 = vmul.f32 %v398, %v402
    %v404 = vpack.c.bf16 %v403, %v403
    %v406 = vsel %vm164, %v404, 0
    %v408 = vsel %vm180, %v324, 0
    %410 = vmatpush.bf16.msra.mxu0 0
    %411 = vmatpush.bf16.msra.mxu0 0
    %412 = vmatpush.bf16.msra.mxu0 0
    %413 = vmatpush.bf16.msra.mxu0 0
    %414 = vmatpush.bf16.msra.mxu0 0
    %415 = vmatpush.bf16.msra.mxu0 0
    %416 = vmatpush.bf16.msra.mxu0 0
    %417 = vmatpush.bf16.msra.mxu0 %v408
    %418 = vmatmul.bf16.gmra.mxu0 %v406
    %v419 = vpop.f32.mrf.mxu0
    %v420 = vadd.f32 0.0, %v419
    %v421 = vpop.f32.mrf.mxu0
    %422 = vdwg.mxu0
    %vm423 = vcmp.gt.f32.partialorder %v420, 0.0
    %v424 = vmin.f32 %v420, 0.0
    %v425 = vmul.f32 %v424, 1.442695
    %v426 = vpow.pop %v425
    %v427 = vsub.f32 %v426, 1.0
    %v428 = vsel %vm423, %v420, %v427
    %vm429 = vcmask 24576
    %430 = vst.msk [vmem:[#allocation9] sm:$0x1] %vm429, %v428
    %s431 = scalar_lea.vmem [#allocation3], 2
    %v432 = vld [vmem:[%s431] sm:$0x3]
    %v433 = vunpack.c.0.s8 %v432
    %vm434 = vcmp.gt.s32.totalorder %v433, 0
    %v435 = vld [vmem:[%s3] sm:$0xf]
    %v436 = vld [vmem:[%s3 + $0x4] sm:$0xf]
    %v439 = vunpack.c.l.b16 %v435
    %v440 = vunpack.c.l.b16 %v436
    %v441 = vpack.c.b16 %v440, %v439
    %v444 = vsel %vm71, %v90, 0
    %446 = vmatpush.bf16.msra.mxu0 0
    %447 = vmatpush.bf16.msra.mxu0 0
    %448 = vmatpush.bf16.msra.mxu0 0
    %449 = vmatpush.bf16.msra.mxu0 0
    %450 = vmatpush.bf16.msra.mxu0 0
    %451 = vmatpush.bf16.msra.mxu0 0
    %452 = vmatpush.bf16.msra.mxu0 0
    %453 = vmatpush.bf16.msra.mxu0 %v441
    %454 = vmatmul.bf16.gmra.mxu0 %v444
    %v455 = vpop.f32.mrf.mxu0
    %v456 = vadd.f32 0.0, %v455
    %v457 = vpop.f32.mrf.mxu0
    %458 = vdwg.mxu0
    %460 = vrot.lane.b32.xlu0 %v456, 126
    %v461 = vpop.permute.xlu0 %460
    %463 = vxpose.xlu0.b32.start [1/16] %v461, 128
    %464 = vxpose.xlu0.b32.cont [2/16] 0.0, 128
    %465 = vxpose.xlu0.b32.cont [3/16] 0.0, 128
    %466 = vxpose.xlu0.b32.cont [4/16] 0.0, 128
    %467 = vxpose.xlu0.b32.cont [5/16] 0.0, 128
    %468 = vxpose.xlu0.b32.cont [6/16] 0.0, 128
    %469 = vxpose.xlu0.b32.cont [7/16] 0.0, 128
    %470 = vxpose.xlu0.b32.cont [8/16] 0.0, 128
    %471 = vxpose.xlu0.b32.cont [9/16] 0.0, 128
    %472 = vxpose.xlu0.b32.cont [10/16] 0.0, 128
    %473 = vxpose.xlu0.b32.cont [11/16] 0.0, 128
    %474 = vxpose.xlu0.b32.cont [12/16] 0.0, 128
    %475 = vxpose.xlu0.b32.cont [13/16] 0.0, 128
    %476 = vxpose.xlu0.b32.cont [14/16] 0.0, 128
    %477 = vxpose.xlu0.b32.cont [15/16] 0.0, 128
    %478 = vxpose.xlu0.b32.end [16/16] 0.0, 128
    %v479 = vpop.trf.xlu0
    %v480 = vpop.trf.xlu0
    %v481 = vpop.trf.xlu0
    %v482 = vpop.trf.xlu0
    %v483 = vpop.trf.xlu0
    %v484 = vpop.trf.xlu0
    %v485 = vpop.trf.xlu0
    %v486 = vpop.trf.xlu0
    %v487 = vpop.trf.xlu0
    %v488 = vpop.trf.xlu0
    %v489 = vpop.trf.xlu0
    %v490 = vpop.trf.xlu0
    %v491 = vpop.trf.xlu0
    %v492 = vpop.trf.xlu0
    %v493 = vpop.trf.xlu0
    %v494 = vpop.trf.xlu0
    %495 = vset.pattern.permute.xlu0 0
    %496 = vperm.xlu0 %495, %v456
    %v497 = vpop.permute.xlu0 %496
    %v499 = vperm.slane %v479, 0
    %v500 = vadd.f32 %v497, %v499
    %vm501 = vcmp.gt.f32.partialorder %v500, 0.0
    %v502 = vmul.f32 %v500, 0.2
    %v503 = vsel %vm501, %v500, %v502
    %v504 = vsel %vm434, %v503, -9e+15
    %v505 = vsel %vm164, %v504, -inf
    %506 = vmax.xlane.f32.xlu0 %v505
    %v507 = vpop.xlane.xlu0 %506
    %v508 = vsub.f32 %v504, %v507
    %v509 = vmul.f32 %v508, 1.442695
    %v510 = vpow.pop %v509
    %v511 = vsel %vm164, %v510, 0.0
    %512 = vadd.xlane.f32.xlu0 %v511
    %v513 = vpop.xlane.xlu0 %512
    %v514 = vrcp.pop %v513
    %v515 = vmul.f32 %v510, %v514
    %v516 = vpack.c.bf16 %v515, %v515
    %v518 = vsel %vm164, %v516, 0
    %v520 = vsel %vm180, %v90, 0
    %522 = vmatpush.bf16.msra.mxu0 0
    %523 = vmatpush.bf16.msra.mxu0 0
    %524 = vmatpush.bf16.msra.mxu0 0
    %525 = vmatpush.bf16.msra.mxu0 0
    %526 = vmatpush.bf16.msra.mxu0 0
    %527 = vmatpush.bf16.msra.mxu0 0
    %528 = vmatpush.bf16.msra.mxu0 0
    %529 = vmatpush.bf16.msra.mxu0 %v520
    %530 = vmatmul.bf16.gmra.mxu0 %v518
    %v531 = vpop.f32.mrf.mxu0
    %v532 = vadd.f32 0.0, %v531
    %v533 = vpop.f32.mrf.mxu0
    %534 = vdwg.mxu0
    %vm535 = vcmp.gt.f32.partialorder %v532, 0.0
    %v536 = vmin.f32 %v532, 0.0
    %v537 = vmul.f32 %v536, 1.442695
    %v538 = vpow.pop %v537
    %v539 = vsub.f32 %v538, 1.0
    %v540 = vsel %vm535, %v532, %v539
    %541 = vst.msk [vmem:[#allocation2] sm:$0xff] %vm164, %v540
    %542 = vrot.lane.b32.xlu0 %v456, 125
    %v543 = vpop.permute.xlu0 %542
    %545 = vxpose.xlu0.b32.start [1/16] %v543, 128
    %546 = vxpose.xlu0.b32.cont [2/16] 0.0, 128
    %547 = vxpose.xlu0.b32.cont [3/16] 0.0, 128
    %548 = vxpose.xlu0.b32.cont [4/16] 0.0, 128
    %549 = vxpose.xlu0.b32.cont [5/16] 0.0, 128
    %550 = vxpose.xlu0.b32.cont [6/16] 0.0, 128
    %551 = vxpose.xlu0.b32.cont [7/16] 0.0, 128
    %552 = vxpose.xlu0.b32.cont [8/16] 0.0, 128
    %553 = vxpose.xlu0.b32.cont [9/16] 0.0, 128
    %554 = vxpose.xlu0.b32.cont [10/16] 0.0, 128
    %555 = vxpose.xlu0.b32.cont [11/16] 0.0, 128
    %556 = vxpose.xlu0.b32.cont [12/16] 0.0, 128
    %557 = vxpose.xlu0.b32.cont [13/16] 0.0, 128
    %558 = vxpose.xlu0.b32.cont [14/16] 0.0, 128
    %559 = vxpose.xlu0.b32.cont [15/16] 0.0, 128
    %560 = vxpose.xlu0.b32.end [16/16] 0.0, 128
    %v561 = vpop.trf.xlu0
    %v562 = vpop.trf.xlu0
    %v563 = vpop.trf.xlu0
    %v564 = vpop.trf.xlu0
    %v565 = vpop.trf.xlu0
    %v566 = vpop.trf.xlu0
    %v567 = vpop.trf.xlu0
    %v568 = vpop.trf.xlu0
    %v569 = vpop.trf.xlu0
    %v570 = vpop.trf.xlu0
    %v571 = vpop.trf.xlu0
    %v572 = vpop.trf.xlu0
    %v573 = vpop.trf.xlu0
    %v574 = vpop.trf.xlu0
    %v575 = vpop.trf.xlu0
    %v576 = vpop.trf.xlu0
    %577 = vset.pattern.permute.xlu0 1
    %578 = vperm.xlu0 %577, %v456
    %v579 = vpop.permute.xlu0 %578
    %v581 = vperm.slane %v561, 0
    %v582 = vadd.f32 %v579, %v581
    %vm583 = vcmp.gt.f32.partialorder %v582, 0.0
    %v584 = vmul.f32 %v582, 0.2
    %v585 = vsel %vm583, %v582, %v584
    %v586 = vsel %vm434, %v585, -9e+15
    %v587 = vsel %vm164, %v586, -inf
    %588 = vmax.xlane.f32.xlu0 %v587
    %v589 = vpop.xlane.xlu0 %588
    %v590 = vsub.f32 %v586, %v589
    %v591 = vmul.f32 %v590, 1.442695
    %v592 = vpow.pop %v591
    %v593 = vsel %vm164, %v592, 0.0
    %594 = vadd.xlane.f32.xlu0 %v593
    %v595 = vpop.xlane.xlu0 %594
    %v596 = vrcp.pop %v595
    %v597 = vmul.f32 %v592, %v596
    %v598 = vpack.c.bf16 %v597, %v597
    %v600 = vunpack.c.l.b16 %v90
    %v601 = vpack.c.b16 %v600, %v600
    %602 = vrot.lane.b32.xlu0 %v601, 120
    %v603 = vpop.permute.xlu0 %602
    %v605 = vsel %vm164, %v598, 0
    %v608 = vsel %vm180, %v603, 0
    %610 = vmatpush.bf16.msra.mxu0 0
    %611 = vmatpush.bf16.msra.mxu0 0
    %612 = vmatpush.bf16.msra.mxu0 0
    %613 = vmatpush.bf16.msra.mxu0 0
    %614 = vmatpush.bf16.msra.mxu0 0
    %615 = vmatpush.bf16.msra.mxu0 0
    %616 = vmatpush.bf16.msra.mxu0 0
    %617 = vmatpush.bf16.msra.mxu0 %v608
    %618 = vmatmul.bf16.gmra.mxu0 %v605
    %v619 = vpop.f32.mrf.mxu0
    %v620 = vadd.f32 0.0, %v619
    %v621 = vpop.f32.mrf.mxu0
    %622 = vdwg.mxu0
    %vm623 = vcmp.gt.f32.partialorder %v620, 0.0
    %v624 = vmin.f32 %v620, 0.0
    %v625 = vmul.f32 %v624, 1.442695
    %v626 = vpow.pop %v625
    %v627 = vsub.f32 %v626, 1.0
    %v628 = vsel %vm623, %v620, %v627
    %630 = vrot.lane.b32.xlu0 %v628, 8
    %v631 = vpop.permute.xlu0 %630
    %633 = vst.msk [vmem:[#allocation2] sm:$0xff] %vm294, %v631
    %v634 = vld [vmem:[#allocation2] sm:$0xff]
    %s635 = scalar_lea.vmem [#allocation8], 1
    %636 = vst.msk [vmem:[%s635] sm:$0x1] %vm297, %v634
    %v637 = vpack.c.bf16 %v634, %v634
    %v638 = vld [vmem:[%s4] sm:$0xf]
    %v639 = vld [vmem:[%s4 + $0x4] sm:$0xf]
    %v642 = vunpack.c.l.b16 %v638
    %v643 = vunpack.c.l.b16 %v639
    %v644 = vpack.c.b16 %v643, %v642
    %v647 = vsel %vm71, %v637, 0
    %649 = vmatpush.bf16.msra.mxu0 0
    %650 = vmatpush.bf16.msra.mxu0 0
    %651 = vmatpush.bf16.msra.mxu0 0
    %652 = vmatpush.bf16.msra.mxu0 0
    %653 = vmatpush.bf16.msra.mxu0 0
    %654 = vmatpush.bf16.msra.mxu0 0
    %655 = vmatpush.bf16.msra.mxu0 0
    %656 = vmatpush.bf16.msra.mxu0 %v644
    %657 = vmatmul.bf16.gmra.mxu0 %v647
    %v658 = vpop.f32.mrf.mxu0
    %v659 = vadd.f32 0.0, %v658
    %v660 = vpop.f32.mrf.mxu0
    %661 = vdwg.mxu0
    %v662 = vpack.c.bf16 %v659, %v659
    %v663 = vld [vmem:[%s5] sm:$0x3]
    %v665 = vsel %vm326, %v662, 0
    %v668 = vsel %vm330, %v663, 0
    %670 = vmatpush.bf16.msra.mxu0 0
    %671 = vmatpush.bf16.msra.mxu0 0
    %672 = vmatpush.bf16.msra.mxu0 0
    %673 = vmatpush.bf16.msra.mxu0 0
    %674 = vmatpush.bf16.msra.mxu0 0
    %675 = vmatpush.bf16.msra.mxu0 0
    %676 = vmatpush.bf16.msra.mxu0 0
    %677 = vmatpush.bf16.msra.mxu0 %v668
    %678 = vmatmul.bf16.gmra.mxu0 %v665
    %v679 = vpop.f32.mrf.mxu0
    %v680 = vadd.f32 0.0, %v679
    %v681 = vpop.f32.mrf.mxu0
    %682 = vdwg.mxu0
    %684 = vrot.lane.b32.xlu0 %v680, 127
    %v685 = vpop.permute.xlu0 %684
    %687 = vxpose.xlu0.b32.start [1/16] %v685, 128
    %688 = vxpose.xlu0.b32.cont [2/16] 0.0, 128
    %689 = vxpose.xlu0.b32.cont [3/16] 0.0, 128
    %690 = vxpose.xlu0.b32.cont [4/16] 0.0, 128
    %691 = vxpose.xlu0.b32.cont [5/16] 0.0, 128
    %692 = vxpose.xlu0.b32.cont [6/16] 0.0, 128
    %693 = vxpose.xlu0.b32.cont [7/16] 0.0, 128
    %694 = vxpose.xlu0.b32.cont [8/16] 0.0, 128
    %695 = vxpose.xlu0.b32.cont [9/16] 0.0, 128
    %696 = vxpose.xlu0.b32.cont [10/16] 0.0, 128
    %697 = vxpose.xlu0.b32.cont [11/16] 0.0, 128
    %698 = vxpose.xlu0.b32.cont [12/16] 0.0, 128
    %699 = vxpose.xlu0.b32.cont [13/16] 0.0, 128
    %700 = vxpose.xlu0.b32.cont [14/16] 0.0, 128
    %701 = vxpose.xlu0.b32.cont [15/16] 0.0, 128
    %702 = vxpose.xlu0.b32.end [16/16] 0.0, 128
    %v703 = vpop.trf.xlu0
    %v704 = vpop.trf.xlu0
    %v705 = vpop.trf.xlu0
    %v706 = vpop.trf.xlu0
    %v707 = vpop.trf.xlu0
    %v708 = vpop.trf.xlu0
    %v709 = vpop.trf.xlu0
    %v710 = vpop.trf.xlu0
    %v711 = vpop.trf.xlu0
    %v712 = vpop.trf.xlu0
    %v713 = vpop.trf.xlu0
    %v714 = vpop.trf.xlu0
    %v715 = vpop.trf.xlu0
    %v716 = vpop.trf.xlu0
    %v717 = vpop.trf.xlu0
    %v718 = vpop.trf.xlu0
    %719 = vset.pattern.permute.xlu0 0
    %720 = vperm.xlu0 %719, %v680
    %v721 = vpop.permute.xlu0 %720
    %v723 = vadd.f32 %v721, %v703
    %vm724 = vcmp.gt.f32.partialorder %v723, 0.0
    %v725 = vmul.f32 %v723, 0.2
    %v726 = vsel %vm724, %v723, %v725
    %v727 = vsel %vm434, %v726, -9e+15
    %v728 = vsel %vm392, %v727, -inf
    %729 = vmax.xlane.f32.xlu0 %v728
    %v730 = vpop.xlane.xlu0 %729
    %v731 = vsub.f32 %v727, %v730
    %v732 = vmul.f32 %v731, 1.442695
    %v733 = vpow.pop %v732
    %v734 = vsel %vm392, %v733, 0.0
    %735 = vadd.xlane.f32.xlu0 %v734
    %v736 = vpop.xlane.xlu0 %735
    %v737 = vrcp.pop %v736
    %v738 = vmul.f32 %v733, %v737
    %v739 = vpack.c.bf16 %v738, %v738
    %v741 = vsel %vm164, %v739, 0
    %v743 = vsel %vm180, %v662, 0
    %745 = vmatpush.bf16.msra.mxu0 0
    %746 = vmatpush.bf16.msra.mxu0 0
    %747 = vmatpush.bf16.msra.mxu0 0
    %748 = vmatpush.bf16.msra.mxu0 0
    %749 = vmatpush.bf16.msra.mxu0 0
    %750 = vmatpush.bf16.msra.mxu0 0
    %751 = vmatpush.bf16.msra.mxu0 0
    %752 = vmatpush.bf16.msra.mxu0 %v743
    %753 = vmatmul.bf16.gmra.mxu0 %v741
    %v754 = vpop.f32.mrf.mxu0
    %v755 = vadd.f32 0.0, %v754
    %v756 = vpop.f32.mrf.mxu0
    %757 = vdwg.mxu0
    %vm758 = vcmp.gt.f32.partialorder %v755, 0.0
    %v759 = vmin.f32 %v755, 0.0
    %v760 = vmul.f32 %v759, 1.442695
    %v761 = vpow.pop %v760
    %v762 = vsub.f32 %v761, 1.0
    %v763 = vsel %vm758, %v755, %v762
    %s764 = scalar_lea.vmem [#allocation9], 1
    %765 = vst.msk [vmem:[%s764] sm:$0x1] %vm429, %v763
    // Predicated region
    $region34: #{tpu_custom_call.1} parent=1 // pred_check
      _
    $region35: #{tpu_custom_call.1} parent=1 // pred_check_branch
      %767 = sbr.rel (0) target = $region37
    $region36: #{tpu_custom_call.1} parent=1 // pred_region
      %769 = vsyncadd [#allocation5], 0
      %s770 = sshll.u32 [#allocation8], 4
      %s771 = int_to_ptr.vmem [resolvable:$true] %s770
      %s772 = sshll.u32 %s6, 4
      %s773 = int_to_ptr.hbm [resolvable:$true] %s772
      %778 = dma.vmem_to_hbm [thread:$0]  %s771, 32, %s773, [#allocation5], 16, 16, 1
    $region37: #{tpu_custom_call.1} parent=1 // pred_fallthru
      _
    // Predicated region
    $region38: #{tpu_custom_call.1} parent=1 // pred_check
      _
    $region39: #{tpu_custom_call.1} parent=1 // pred_check_branch
      %780 = sbr.rel (0) target = $region41
    $region40: #{tpu_custom_call.1} parent=1 // pred_region
      %782 = vsyncadd [#allocation10], 0
      %s783 = sshll.u32 [#allocation9], 4
      %s784 = int_to_ptr.vmem [resolvable:$true] %s783
      %s785 = sshll.u32 %s7, 4
      %s786 = int_to_ptr.hbm [resolvable:$true] %s785
      %791 = dma.vmem_to_hbm [thread:$0]  %s784, 32, %s786, [#allocation10], 16, 16, 1
    $region41: #{tpu_custom_call.1} parent=1 // pred_fallthru
      _
    // Predicated region
    $region42: #{tpu_custom_call.1} parent=1 // pred_check
      _
    $region43: #{tpu_custom_call.1} parent=1 // pred_check_branch
      %793 = sbr.rel (0) target = $region45
    $region44: #{tpu_custom_call.1} parent=1 // pred_region
      %795 = dma.done [#allocation5], 32
    $region45: #{tpu_custom_call.1} parent=1 // pred_fallthru
      _
    // Predicated region
    $region46: #{tpu_custom_call.1} parent=1 // pred_check
      _
    $region47: #{tpu_custom_call.1} parent=1 // pred_check_branch
      %797 = sbr.rel (0) target = $region49
    $region48: #{tpu_custom_call.1} parent=1 // pred_region
      %799 = dma.done [#allocation10], 32
    $region49: #{tpu_custom_call.1} parent=1 // pred_fallthru
      _
    %800 = vsyncpa [#allocation4], 1
    %801 = vsyncpa [#allocation7], 1
    %802 = vsyncpa [#allocation5], 1
    %803 = vsyncpa [#allocation10], 1

</llo_original>
